<compile_context>
chip_gen: v7x
topology: tpu7x:2x2x1
jax: 0.10.0
libtpu: 0.0.40
codegen_flags: <defaults>
</compile_context>

<pallas_src>
from functools import partial
import math

import jax
import jax.numpy as jnp
from jax import lax
from jax.experimental import pallas as pl
from jax.experimental.pallas import tpu as pltpu

B = 8     # batch size (fixed by the reference implementation)
D = 64    # feature dim (fixed by the reference implementation)
C = 16    # number of label "classes" (free; labels are (B, C<=64), zero-padded to D lanes)

_LN2 = math.log(2.0)


def _triplet_loss_kernel(sel_diff_ref, sel_j_ref, klt_ref, rsel_ref, *refs,
                         margin, distinct_target, distinct_tlabels):
    """One grid step: G loss instances.

    refs = (src, [tgt], sl, [tl], out); src/tgt/sl/tl are (G, 8, 64), out is (1, G).
    Constants: sel_diff (8,64), sel_j (64,8), klt (1,64), rsel (G*8, G) -- resident.
    """
    f32 = jnp.float32
    i = 0
    src = refs[i][...].astype(f32); i += 1
    if distinct_target:
        tgt = refs[i][...].astype(f32); i += 1
    else:
        tgt = src                                   # shared ref: no duplicate DMA
    sl = refs[i][...].astype(f32); i += 1
    if distinct_tlabels:
        tl = refs[i][...].astype(f32); i += 1
    else:
        tl = sl
    out_ref = refs[i]

    g = src.shape[0]
    g8 = g * B

    # ---- ONE fused batched MXU einsum for all pairwise products -----------------------
    #   lhs = [tgt; s_labels; ones]              (g, 24, 64)
    #   rhs = [src; t_labels; src^2 (; tgt^2)]   (g, 24 or 32, 64)
    ones = jnp.ones((g, B, D), f32)
    lhs = jnp.concatenate([tgt, sl, ones], axis=1)
    rhs_blocks = [src, tl, src * src]
    if distinct_target:
        rhs_blocks.append(tgt * tgt)
    rhs = jnp.concatenate(rhs_blocks, axis=1)
    R = jnp.einsum('gif,gjf->gij', lhs, rhs, preferred_element_type=f32)

    cross = R[:, 0:8, 0:8]          # [g, i, j] = tgt_i . src_j
    sim_raw = R[:, 8:16, 8:16]      # [g, i, j] = s_labels_i . t_labels_j
    a_sq = R[:, 16:24, 16:24]       # [g, i, j] = ||src_j||^2   (rows identical)
    b_sq = R[:, 16:24, 24:32] if distinct_target else a_sq      # ||tgt_j||^2

    # ---- cos_distance1: Heron-formula "distance" ---------------------------------------
    tgt_nrm = jnp.sum(tgt * tgt, axis=2, keepdims=True)          # (g,8,1) ||tgt_i||^2
    c_sq = jnp.maximum(a_sq + tgt_nrm - 2.0 * cross, 0.0)        # ||src_j - tgt_i||^2
    if not distinct_target:
        # target IS source -> the diagonal is exactly zero; the matmul form suffers
        # catastrophic cancellation there, so force the mathematically exact value.
        ii = lax.broadcasted_iota(jnp.int32, (B, B), 0)
        jj2 = lax.broadcasted_iota(jnp.int32, (B, B), 1)
        c_sq = jnp.where((ii == jj2)[None, :, :], 0.0, c_sq)

    a = jnp.sqrt(a_sq)
    b = jnp.sqrt(b_sq)
    c = jnp.sqrt(c_sq)
    p = 0.5 * (a + b + c)
    s = (p - a) * (p - b) * (p - c) * p
    d = jnp.sqrt(jnp.maximum(s, 0.0))                            # pairwise_dist (g,8,8)

    # EUP work done BEFORE the lane-pack (64 exp2 per instance, not 1024).
    gain = jnp.exp2(sim_raw) - 1.0                               # 2**sim_origin - 1
    sim01 = jnp.where(sim_raw > 0.0, 1.0, 0.0)

    # ---- flatten instances into sublanes and lane-pack the (j, k) pair axis ------------
    d_f = d.reshape(g8, B)
    gain_f = gain.reshape(g8, B)
    s01_f = sim01.reshape(g8, B)
    sr_f = sim_raw.reshape(g8, B)

    # sel_diff[c, 8k+j] = 1{c==j} - 1{c==k}  =>  (X @ sel_diff)[., 8k+j] = X[., j] - X[., k]
    dn = (((1,), (0,)), ((), ()))
    stacked = jnp.concatenate([d_f, gain_f, s01_f, sr_f], axis=0)          # (4*g8, 8)
    packed = lax.dot_general(stacked, sel_diff_ref[...], dn,
                             preferred_element_type=f32)                   # (4*g8, 64)
    d_diff = packed[0:g8]               # d[i,j] - d[i,k]
    gain_diff = packed[g8:2 * g8]       # gain[i,j] - gain[i,k]
    s01_diff = packed[2 * g8:3 * g8]    # sim[i,j] - sim[i,k]   (exact: 0/1 values)
    sr_diff = packed[3 * g8:4 * g8]     # sim_origin[i,j] - sim_origin[i,k]

    # ---- NDCG normalizer Z (get_triplet_mask) via descending-sort rank -----------------
    klt = klt_ref[...]                                           # (1,64): 1 where k < j
    cmp = (jnp.where(sr_diff < 0.0, 1.0, 0.0)
           + jnp.where(sr_diff == 0.0, 1.0, 0.0) * klt)          # k "beats" j
    rank = lax.dot_general(cmp, sel_j_ref[...], dn,
                           preferred_element_type=f32)           # (g8, 8) sort position
    th = jnp.log(rank + 2.0) * (1.0 / _LN2)                      # log2(position + 2)
    z = jnp.sum(gain_f / th, axis=1, keepdims=True)              # (g8, 1)
    inv_z = jnp.where(z > 0.0, 1.0 / z, 0.0)                     # guard (zero-padded rows)

    # ---- triplet cube: 8 anchors x 64 (pos j, neg k) pairs per instance ----------------
    weight = gain_diff * inv_z                                   # so[i,j] - so[i,k]
    mask = jnp.where(s01_diff > 0.5, 1.0, 0.0)                   # sim[i,j]*(1-sim[i,k])
    trip = d_diff + margin
    val = jnp.maximum(weight * mask * trip, 0.0)                 # (g8, 64) = g * 8^3 triplets

    v_sum = jnp.sum(val, axis=1, keepdims=True)                  # (g8, 1)
    v_cnt = jnp.sum(jnp.where(val > 1e-16, 1.0, 0.0), axis=1, keepdims=True)

    # ---- per-instance reduction into a lane-dense (1, G) output row --------------------
    rsel = rsel_ref[...]                                         # (g8, g): 1{row//8 == g}
    sums = jnp.sum(v_sum * rsel, axis=0, keepdims=True)          # (1, g)
    cnts = jnp.sum(v_cnt * rsel, axis=0, keepdims=True)          # (1, g)
    out_ref[...] = sums / (cnts + 1e-16)                         # reduction='mean'


def triplet_loss_batched(source, s_labels, target=None, t_labels=None,
                         margin=0.0, block_g=None):
    """N independent TripletLoss instances in one gridded pallas_call.

    source/target: (N, 8, 64); s_labels/t_labels: (N, 8, C<=64).  Returns (N,) losses.
    """
    distinct_target = (target is not None) and (target is not source)
    distinct_tlabels = (t_labels is not None) and (t_labels is not s_labels)

    n = source.shape[0]
    assert source.shape == (n, B, D), source.shape
    f32 = jnp.float32

    def prep_feat(x):
        assert x.shape == (n, B, D), x.shape
        return x.astype(f32)

    def prep_lab(x):
        assert x.shape[:2] == (n, B) and x.shape[2] <= D, x.shape
        x = x.astype(f32)
        if x.shape[2] < D:
            x = jnp.pad(x, ((0, 0), (0, 0), (0, D - x.shape[2])))
        return x

    src = prep_feat(source)
    sl = prep_lab(s_labels)
    tgt = prep_feat(target) if distinct_target else None
    tl = prep_lab(t_labels) if distinct_tlabels else None

    # Per-step instance count G: big enough to amortize the fixed per-step overhead and
    # fill sublanes, small enough that (<=4 inputs x G x 2 KiB x 2 double-buffers +
    # intermediates) stays well inside the default scoped VMEM on v5e/v6e/v7x.
    if block_g is None:
        block_g = int(max(1, min(128, pl.next_power_of_2(max(int(n), 1)))))
    block_g = int(block_g)
    num_steps = int(pl.cdiv(n, block_g))
    n_pad = num_steps * block_g
    if n_pad > n:
        pad = n_pad - n

        def padz(x):
            return jnp.concatenate(
                [x, jnp.zeros((pad,) + x.shape[1:], x.dtype)], axis=0)

        src = padz(src)
        sl = padz(sl)
        if distinct_target:
            tgt = padz(tgt)
        if distinct_tlabels:
            tl = padz(tl)

    g8 = block_g * B

    # Grid-invariant selector constants, hoisted out of the per-step body.  Their
    # index_map always returns block (0, 0) so they are DMA'd once and stay resident.
    lane = jnp.arange(B * B)
    jj = lane % B                               # positive index j of lane l = 8*k + j
    kk = lane // B                              # negative index k
    col = jnp.arange(B)
    sel_diff = ((col[:, None] == jj[None, :]).astype(f32)
                - (col[:, None] == kk[None, :]).astype(f32))       # (8, 64)
    sel_j = (jj[:, None] == col[None, :]).astype(f32)              # (64, 8)
    klt = (kk < jj).astype(f32)[None, :]                           # (1, 64)
    rsel = (jnp.arange(g8)[:, None] // B
            == jnp.arange(block_g)[None, :]).astype(f32)           # (g8, block_g)

    const_specs = [
        pl.BlockSpec((B, B * B), lambda i: (0, 0)),
        pl.BlockSpec((B * B, B), lambda i: (0, 0)),
        pl.BlockSpec((1, B * B), lambda i: (0, 0)),
        pl.BlockSpec((g8, block_g), lambda i: (0, 0)),
    ]
    data_spec = pl.BlockSpec((block_g, B, D), lambda i: (i, 0, 0))

    args = [sel_diff, sel_j, klt, rsel, src]
    in_specs = const_specs + [data_spec]
    if distinct_target:
        args.append(tgt)
        in_specs.append(data_spec)
    args.append(sl)
    in_specs.append(data_spec)
    if distinct_tlabels:
        args.append(tl)
        in_specs.append(data_spec)

    n_data = 2 + int(distinct_target) + int(distinct_tlabels)
    cost = pl.CostEstimate(
        flops=int(n_pad) * 160_000,
        transcendentals=int(n_pad) * 512,
        bytes_accessed=int(n_pad) * (n_data * B * D * 4) + int(n_pad) * 4 + 20_000,
    )

    kernel = partial(_triplet_loss_kernel, margin=float(margin),
                     distinct_target=distinct_target,
                     distinct_tlabels=distinct_tlabels)

    out = pl.pallas_call(
        kernel,
        out_shape=jax.ShapeDtypeStruct((num_steps, 1, block_g), jnp.float32),
        grid=(num_steps,),
        in_specs=in_specs,
        out_specs=pl.BlockSpec((None, 1, block_g), lambda i: (i, 0, 0)),
        compiler_params=pltpu.CompilerParams(
            dimension_semantics=("parallel",)),
        cost_estimate=cost,
    )(*args)
    return out.reshape(-1)[:n]


def triplet_loss(source, s_labels, target=None, t_labels=None, margin=0.0):
    """Pallas equivalent of TripletLoss.forward (reduction='mean') for one instance."""
    tgt = None if target is None else target[None]
    tl = None if t_labels is None else t_labels[None]
    out = triplet_loss_batched(source[None], s_labels[None], tgt, tl,
                               margin=margin, block_g=1)
    return out[0]


def _reference(source, s_labels, target=None, t_labels=None, margin=0.0):
    """Torch-faithful pure-JAX reference (for sanity checking the kernel)."""
    if target is None:
        target = source
    if t_labels is None:
        t_labels = s_labels

    def euclid(a_, b_):
        sq_a = jnp.tile(a_, (8, 1))                       # (64, 64), row r = a_[r % 8]
        sq_b = jnp.tile(b_, (1, 8)).reshape(64, 64)       # row r = b_[r // 8]
        x = (sq_a - sq_b) ** 2
        return jnp.sqrt(jnp.sum(x, axis=1)).reshape(8, 8)

    zer = jnp.zeros((8, 64), jnp.float32)
    a = euclid(source, zer)
    b = euclid(target, zer)
    c = euclid(source, target)
    p = 0.5 * (a + b + c)
    s = jnp.clip((p - a) * (p - b) * (p - c) * p, 0.0)
    d = jnp.sqrt(s)

    sim_origin = s_labels @ t_labels.T
    sim = (sim_origin > 0).astype(jnp.float32)
    ideal = -jnp.sort(-sim_origin, axis=1)
    th = jnp.log2(jnp.arange(8, dtype=jnp.float32) + 2.0)[None, :]
    Z = ((2.0 ** ideal - 1.0) / th).sum(axis=1, keepdims=True)
    so = (2.0 ** sim_origin - 1.0) / Z

    tl3 = d[:, :, None] - d[:, None, :] + margin
    w = so[:, :, None] - so[:, None, :]
    m = sim[:, :, None] * (1.0 - sim[:, None, :])
    val = jnp.clip(w * m * tl3, 0.0)
    num_pos = (val > 1e-16).sum()
    return val.sum() / (num_pos + 1e-16)


if __name__ == "__main__":
    key = jax.random.PRNGKey(0)
    k_src, k_tgt = jax.random.split(key)

    N = 6                                    # several loss instances -> one gridded call
    source = jax.random.normal(k_src, (N, B, D), dtype=jnp.float32)
    target = jax.random.normal(k_tgt, (N, B, D), dtype=jnp.float32)

    # Deterministic multi-hot labels (two "classes" per sample, varies per instance).
    idx = jnp.arange(B)
    s_labels = jnp.stack([
        jax.nn.one_hot((idx + i) % 4, C) + jax.nn.one_hot(4 + (idx + 2 * i) % 3, C)
        for i in range(N)
    ]).astype(jnp.float32)
    t_labels = jnp.roll(s_labels, 1, axis=1)

    # Distinct source/target path: block_g=4 -> grid of 2 steps + 2 zero-padded instances.
    losses = triplet_loss_batched(source, s_labels, target, t_labels,
                                  margin=0.0, block_g=4)
    losses = jax.block_until_ready(losses)
    assert losses.shape == (N,), losses.shape
    for i in range(N):
        ref = _reference(source[i], s_labels[i], target[i], t_labels[i], margin=0.0)
        assert bool(jnp.isfinite(losses[i])), f"non-finite loss[{i}]: {losses[i]}"
        assert bool(jnp.allclose(losses[i], ref, rtol=5e-2, atol=1e-3)), (
            f"instance {i}: kernel {float(losses[i])} vs reference {float(ref)}")

    # Default module path (target=None, t_labels=None -> shared refs, no duplicate DMA).
    l0 = triplet_loss(source[0], s_labels[0], margin=0.0)
    l0 = jax.block_until_ready(l0)
    ref0 = _reference(source[0], s_labels[0], margin=0.0)
    assert bool(jnp.isfinite(l0)), f"non-finite shared-path loss: {l0}"
    assert bool(jnp.allclose(l0, ref0, rtol=5e-2, atol=1e-3)), (
        f"shared-source path: kernel {float(l0)} vs reference {float(ref0)}")

    print("KERNEL_OK")
</pallas_src>

<mosaic_0001>
module attributes {stable_mosaic.version = 11 : i64} {
  func.func @_triplet_loss_kernel(%arg0: i32, %arg1: memref<8x64xf32, #tpu.memory_space<vmem>>, %arg2: memref<64x8xf32, #tpu.memory_space<vmem>>, %arg3: memref<1x64xf32, #tpu.memory_space<vmem>>, %arg4: memref<32x4xf32, #tpu.memory_space<vmem>>, %arg5: memref<4x8x64xf32, #tpu.memory_space<vmem>>, %arg6: memref<4x8x64xf32, #tpu.memory_space<vmem>>, %arg7: memref<4x8x64xf32, #tpu.memory_space<vmem>>, %arg8: memref<4x8x64xf32, #tpu.memory_space<vmem>>, %arg9: memref<1x1x4xf32, #tpu.memory_space<vmem>>) attributes {dimension_semantics = [#tpu.dimension_semantics<parallel>], iteration_bounds = array<i64: 2>, scalar_prefetch = 0 : i64, scratch_operands = 0 : i64, tpu.core_type = #tpu.core_type<tc>, window_params = [{pipeline_mode = #tpu.pipeline_mode<synchronous>, transform_indices = @transform_0, window_bounds = array<i64: 8, 64>}, {pipeline_mode = #tpu.pipeline_mode<synchronous>, transform_indices = @transform_1, window_bounds = array<i64: 64, 8>}, {pipeline_mode = #tpu.pipeline_mode<synchronous>, transform_indices = @transform_2, window_bounds = array<i64: 1, 64>}, {pipeline_mode = #tpu.pipeline_mode<synchronous>, transform_indices = @transform_3, window_bounds = array<i64: 32, 4>}, {transform_indices = @transform_4, window_bounds = array<i64: 4, 8, 64>}, {transform_indices = @transform_5, window_bounds = array<i64: 4, 8, 64>}, {transform_indices = @transform_6, window_bounds = array<i64: 4, 8, 64>}, {transform_indices = @transform_7, window_bounds = array<i64: 4, 8, 64>}, {transform_indices = @transform_8, window_bounds = array<i64: 1, 1, 4>}]} {
    %c0 = arith.constant 0 : index
    %c0_0 = arith.constant 0 : index
    %c0_1 = arith.constant 0 : index
    %0 = vector.load %arg5[%c0, %c0_0, %c0_1] : memref<4x8x64xf32, #tpu.memory_space<vmem>>, vector<4x8x64xf32>
    %c0_2 = arith.constant 0 : index
    %c0_3 = arith.constant 0 : index
    %c0_4 = arith.constant 0 : index
    %1 = vector.load %arg6[%c0_2, %c0_3, %c0_4] : memref<4x8x64xf32, #tpu.memory_space<vmem>>, vector<4x8x64xf32>
    %c0_5 = arith.constant 0 : index
    %c0_6 = arith.constant 0 : index
    %c0_7 = arith.constant 0 : index
    %2 = vector.load %arg7[%c0_5, %c0_6, %c0_7] : memref<4x8x64xf32, #tpu.memory_space<vmem>>, vector<4x8x64xf32>
    %c0_8 = arith.constant 0 : index
    %c0_9 = arith.constant 0 : index
    %c0_10 = arith.constant 0 : index
    %3 = vector.load %arg8[%c0_8, %c0_9, %c0_10] : memref<4x8x64xf32, #tpu.memory_space<vmem>>, vector<4x8x64xf32>
    %cst = arith.constant 1.000000e+00 : f32
    %4 = vector.broadcast %cst : f32 to vector<4x8x64xf32>
    %5 = tpu.concatenate %1, %2, %4 in 1 : vector<4x8x64xf32>, vector<4x8x64xf32>, vector<4x8x64xf32> -> vector<4x24x64xf32>
    %6 = arith.mulf %0, %0 : vector<4x8x64xf32>
    %7 = arith.mulf %1, %1 : vector<4x8x64xf32>
    %8 = tpu.concatenate %0, %3, %6, %7 in 1 : vector<4x8x64xf32>, vector<4x8x64xf32>, vector<4x8x64xf32>, vector<4x8x64xf32> -> vector<4x32x64xf32>
    "tpu.trace_start"() <{level = 10 : i32, message = "gif,gjf->gij"}> : () -> ()
    %cst_11 = arith.constant dense<0.000000e+00> : vector<4x24x32xf32>
    %9 = tpu.matmul %5, %8, %cst_11 {dimension_numbers = #tpu.dot_dimension_numbers<[2], [2], [1], [1], [0, 0, 0, 1, 1, 1], [0], [0]>} : vector<4x24x64xf32>, vector<4x32x64xf32>, vector<4x24x32xf32> -> vector<4x24x32xf32>
    "tpu.trace_stop"() : () -> ()
    %10 = vector.extract_strided_slice %9 {offsets = [0, 0, 0], sizes = [4, 8, 8], strides = [1, 1, 1]} : vector<4x24x32xf32> to vector<4x8x8xf32>
    %11 = vector.extract_strided_slice %9 {offsets = [0, 8, 8], sizes = [4, 8, 8], strides = [1, 1, 1]} : vector<4x24x32xf32> to vector<4x8x8xf32>
    %12 = vector.extract_strided_slice %9 {offsets = [0, 16, 16], sizes = [4, 8, 8], strides = [1, 1, 1]} : vector<4x24x32xf32> to vector<4x8x8xf32>
    %13 = vector.extract_strided_slice %9 {offsets = [0, 16, 24], sizes = [4, 8, 8], strides = [1, 1, 1]} : vector<4x24x32xf32> to vector<4x8x8xf32>
    %14 = arith.mulf %1, %1 : vector<4x8x64xf32>
    %cst_12 = arith.constant dense<0.000000e+00> : vector<4x8xf32>
    %15 = vector.multi_reduction <add>, %14, %cst_12 [2] : vector<4x8x64xf32> to vector<4x8xf32>
    %16 = vector.shape_cast %15 : vector<4x8xf32> to vector<4x8x1xf32>
    %17 = vector.broadcast %16 : vector<4x8x1xf32> to vector<4x8x8xf32>
    %18 = arith.addf %12, %17 : vector<4x8x8xf32>
    %cst_13 = arith.constant 2.000000e+00 : f32
    %19 = vector.broadcast %cst_13 : f32 to vector<4x8x8xf32>
    %20 = arith.mulf %19, %10 : vector<4x8x8xf32>
    %21 = arith.subf %18, %20 : vector<4x8x8xf32>
    %cst_14 = arith.constant 0.000000e+00 : f32
    %22 = vector.broadcast %cst_14 : f32 to vector<4x8x8xf32>
    %23 = arith.maximumf %21, %22 : vector<4x8x8xf32>
    %24 = math.sqrt %12 : vector<4x8x8xf32>
    %25 = math.sqrt %13 : vector<4x8x8xf32>
    %26 = math.sqrt %23 : vector<4x8x8xf32>
    %27 = arith.addf %24, %25 : vector<4x8x8xf32>
    %28 = arith.addf %27, %26 : vector<4x8x8xf32>
    %cst_15 = arith.constant 5.000000e-01 : f32
    %29 = vector.broadcast %cst_15 : f32 to vector<4x8x8xf32>
    %30 = arith.mulf %29, %28 : vector<4x8x8xf32>
    %31 = arith.subf %30, %24 : vector<4x8x8xf32>
    %32 = arith.subf %30, %25 : vector<4x8x8xf32>
    %33 = arith.mulf %31, %32 : vector<4x8x8xf32>
    %34 = arith.subf %30, %26 : vector<4x8x8xf32>
    %35 = arith.mulf %33, %34 : vector<4x8x8xf32>
    %36 = arith.mulf %35, %30 : vector<4x8x8xf32>
    %cst_16 = arith.constant 0.000000e+00 : f32
    %37 = vector.broadcast %cst_16 : f32 to vector<4x8x8xf32>
    %38 = arith.maximumf %36, %37 : vector<4x8x8xf32>
    %39 = math.sqrt %38 : vector<4x8x8xf32>
    %40 = math.exp2 %11 : vector<4x8x8xf32>
    %cst_17 = arith.constant 1.000000e+00 : f32
    %41 = vector.broadcast %cst_17 : f32 to vector<4x8x8xf32>
    %42 = arith.subf %40, %41 : vector<4x8x8xf32>
    %cst_18 = arith.constant 0.000000e+00 : f32
    %43 = vector.broadcast %cst_18 : f32 to vector<4x8x8xf32>
    %44 = arith.cmpf ogt, %11, %43 : vector<4x8x8xf32>
    %cst_19 = arith.constant 1.000000e+00 : f32
    %cst_20 = arith.constant 0.000000e+00 : f32
    %45 = vector.broadcast %cst_19 : f32 to vector<4x8x8xf32>
    %46 = vector.broadcast %cst_20 : f32 to vector<4x8x8xf32>
    %47 = arith.select %44, %45, %46 : vector<4x8x8xi1>, vector<4x8x8xf32>
    %48 = vector.shape_cast %39 : vector<4x8x8xf32> to vector<32x8xf32>
    %49 = vector.shape_cast %42 : vector<4x8x8xf32> to vector<32x8xf32>
    %50 = vector.shape_cast %47 : vector<4x8x8xf32> to vector<32x8xf32>
    %51 = vector.shape_cast %11 : vector<4x8x8xf32> to vector<32x8xf32>
    %52 = tpu.concatenate %48, %49, %50, %51 in 0 : vector<32x8xf32>, vector<32x8xf32>, vector<32x8xf32>, vector<32x8xf32> -> vector<128x8xf32>
    %c0_21 = arith.constant 0 : index
    %c0_22 = arith.constant 0 : index
    %53 = vector.load %arg1[%c0_21, %c0_22] : memref<8x64xf32, #tpu.memory_space<vmem>>, vector<8x64xf32>
    %cst_23 = arith.constant dense<0.000000e+00> : vector<128x64xf32>
    %54 = tpu.matmul %52, %53, %cst_23 {dimension_numbers = #tpu.dot_dimension_numbers<[1], [0], [0], [1], [0, 0, 1, 1], [], []>} : vector<128x8xf32>, vector<8x64xf32>, vector<128x64xf32> -> vector<128x64xf32>
    %55 = vector.extract_strided_slice %54 {offsets = [0, 0], sizes = [32, 64], strides = [1, 1]} : vector<128x64xf32> to vector<32x64xf32>
    %56 = vector.extract_strided_slice %54 {offsets = [32, 0], sizes = [32, 64], strides = [1, 1]} : vector<128x64xf32> to vector<32x64xf32>
    %57 = vector.extract_strided_slice %54 {offsets = [64, 0], sizes = [32, 64], strides = [1, 1]} : vector<128x64xf32> to vector<32x64xf32>
    %58 = vector.extract_strided_slice %54 {offsets = [96, 0], sizes = [32, 64], strides = [1, 1]} : vector<128x64xf32> to vector<32x64xf32>
    %c0_24 = arith.constant 0 : index
    %c0_25 = arith.constant 0 : index
    %59 = vector.load %arg3[%c0_24, %c0_25] : memref<1x64xf32, #tpu.memory_space<vmem>>, vector<1x64xf32>
    %cst_26 = arith.constant 0.000000e+00 : f32
    %60 = vector.broadcast %cst_26 : f32 to vector<32x64xf32>
    %61 = arith.cmpf olt, %58, %60 : vector<32x64xf32>
    %cst_27 = arith.constant 1.000000e+00 : f32
    %cst_28 = arith.constant 0.000000e+00 : f32
    %62 = vector.broadcast %cst_27 : f32 to vector<32x64xf32>
    %63 = vector.broadcast %cst_28 : f32 to vector<32x64xf32>
    %64 = arith.select %61, %62, %63 : vector<32x64xi1>, vector<32x64xf32>
    %cst_29 = arith.constant 0.000000e+00 : f32
    %65 = vector.broadcast %cst_29 : f32 to vector<32x64xf32>
    %66 = arith.cmpf oeq, %58, %65 : vector<32x64xf32>
    %cst_30 = arith.constant 1.000000e+00 : f32
    %cst_31 = arith.constant 0.000000e+00 : f32
    %67 = vector.broadcast %cst_30 : f32 to vector<32x64xf32>
    %68 = vector.broadcast %cst_31 : f32 to vector<32x64xf32>
    %69 = arith.select %66, %67, %68 : vector<32x64xi1>, vector<32x64xf32>
    %70 = vector.broadcast %59 : vector<1x64xf32> to vector<32x64xf32>
    %71 = arith.mulf %69, %70 : vector<32x64xf32>
    %72 = arith.addf %64, %71 : vector<32x64xf32>
    %c0_32 = arith.constant 0 : index
    %c0_33 = arith.constant 0 : index
    %73 = vector.load %arg2[%c0_32, %c0_33] : memref<64x8xf32, #tpu.memory_space<vmem>>, vector<64x8xf32>
    %cst_34 = arith.constant dense<0.000000e+00> : vector<32x8xf32>
    %74 = tpu.matmul %72, %73, %cst_34 {dimension_numbers = #tpu.dot_dimension_numbers<[1], [0], [0], [1], [0, 0, 1, 1], [], []>} : vector<32x64xf32>, vector<64x8xf32>, vector<32x8xf32> -> vector<32x8xf32>
    %cst_35 = arith.constant 2.000000e+00 : f32
    %75 = vector.broadcast %cst_35 : f32 to vector<32x8xf32>
    %76 = arith.addf %74, %75 : vector<32x8xf32>
    %77 = math.log %76 : vector<32x8xf32>
    %cst_36 = arith.constant 1.44269502 : f32
    %78 = vector.broadcast %cst_36 : f32 to vector<32x8xf32>
    %79 = arith.mulf %77, %78 : vector<32x8xf32>
    %80 = arith.divf %49, %79 : vector<32x8xf32>
    %cst_37 = arith.constant dense<0.000000e+00> : vector<32xf32>
    %81 = vector.multi_reduction <add>, %80, %cst_37 [1] : vector<32x8xf32> to vector<32xf32>
    %82 = vector.shape_cast %81 : vector<32xf32> to vector<32x1xf32>
    %cst_38 = arith.constant 0.000000e+00 : f32
    %83 = vector.broadcast %cst_38 : f32 to vector<32x1xf32>
    %84 = arith.cmpf ogt, %82, %83 : vector<32x1xf32>
    %cst_39 = arith.constant 1.000000e+00 : f32
    %85 = vector.broadcast %cst_39 : f32 to vector<32x1xf32>
    %86 = arith.divf %85, %82 : vector<32x1xf32>
    %cst_40 = arith.constant 0.000000e+00 : f32
    %87 = vector.broadcast %cst_40 : f32 to vector<32x1xf32>
    %88 = arith.select %84, %86, %87 : vector<32x1xi1>, vector<32x1xf32>
    %89 = vector.broadcast %88 : vector<32x1xf32> to vector<32x64xf32>
    %90 = arith.mulf %56, %89 : vector<32x64xf32>
    %cst_41 = arith.constant 5.000000e-01 : f32
    %91 = vector.broadcast %cst_41 : f32 to vector<32x64xf32>
    %92 = arith.cmpf ogt, %57, %91 : vector<32x64xf32>
    %cst_42 = arith.constant 1.000000e+00 : f32
    %cst_43 = arith.constant 0.000000e+00 : f32
    %93 = vector.broadcast %cst_42 : f32 to vector<32x64xf32>
    %94 = vector.broadcast %cst_43 : f32 to vector<32x64xf32>
    %95 = arith.select %92, %93, %94 : vector<32x64xi1>, vector<32x64xf32>
    %cst_44 = arith.constant 0.000000e+00 : f32
    %96 = vector.broadcast %cst_44 : f32 to vector<32x64xf32>
    %97 = arith.addf %55, %96 : vector<32x64xf32>
    %98 = arith.mulf %90, %95 : vector<32x64xf32>
    %99 = arith.mulf %98, %97 : vector<32x64xf32>
    %cst_45 = arith.constant 0.000000e+00 : f32
    %100 = vector.broadcast %cst_45 : f32 to vector<32x64xf32>
    %101 = arith.maximumf %99, %100 : vector<32x64xf32>
    %cst_46 = arith.constant dense<0.000000e+00> : vector<32xf32>
    %102 = vector.multi_reduction <add>, %101, %cst_46 [1] : vector<32x64xf32> to vector<32xf32>
    %103 = vector.shape_cast %102 : vector<32xf32> to vector<32x1xf32>
    %cst_47 = arith.constant 1.000000e-16 : f32
    %104 = vector.broadcast %cst_47 : f32 to vector<32x64xf32>
    %105 = arith.cmpf ogt, %101, %104 : vector<32x64xf32>
    %cst_48 = arith.constant 1.000000e+00 : f32
    %cst_49 = arith.constant 0.000000e+00 : f32
    %106 = vector.broadcast %cst_48 : f32 to vector<32x64xf32>
    %107 = vector.broadcast %cst_49 : f32 to vector<32x64xf32>
    %108 = arith.select %105, %106, %107 : vector<32x64xi1>, vector<32x64xf32>
    %cst_50 = arith.constant dense<0.000000e+00> : vector<32xf32>
    %109 = vector.multi_reduction <add>, %108, %cst_50 [1] : vector<32x64xf32> to vector<32xf32>
    %110 = vector.shape_cast %109 : vector<32xf32> to vector<32x1xf32>
    %c0_51 = arith.constant 0 : index
    %c0_52 = arith.constant 0 : index
    %111 = vector.load %arg4[%c0_51, %c0_52] : memref<32x4xf32, #tpu.memory_space<vmem>>, vector<32x4xf32>
    %112 = vector.broadcast %103 : vector<32x1xf32> to vector<32x4xf32>
    %113 = arith.mulf %112, %111 : vector<32x4xf32>
    %cst_53 = arith.constant dense<0.000000e+00> : vector<4xf32>
    %114 = vector.multi_reduction <add>, %113, %cst_53 [0] : vector<32x4xf32> to vector<4xf32>
    %115 = vector.shape_cast %114 : vector<4xf32> to vector<1x4xf32>
    %116 = vector.broadcast %110 : vector<32x1xf32> to vector<32x4xf32>
    %117 = arith.mulf %116, %111 : vector<32x4xf32>
    %cst_54 = arith.constant dense<0.000000e+00> : vector<4xf32>
    %118 = vector.multi_reduction <add>, %117, %cst_54 [0] : vector<32x4xf32> to vector<4xf32>
    %119 = vector.shape_cast %118 : vector<4xf32> to vector<1x4xf32>
    %cst_55 = arith.constant 1.000000e-16 : f32
    %120 = vector.broadcast %cst_55 : f32 to vector<1x4xf32>
    %121 = arith.addf %119, %120 : vector<1x4xf32>
    %122 = arith.divf %115, %121 : vector<1x4xf32>
    %c0_56 = arith.constant 0 : index
    %c0_57 = arith.constant 0 : index
    %c0_58 = arith.constant 0 : index
    %123 = vector.load %arg9[%c0_56, %c0_57, %c0_58] : memref<1x1x4xf32, #tpu.memory_space<vmem>>, vector<1x1x4xf32>
    %124 = vector.shape_cast %123 : vector<1x1x4xf32> to vector<1x4xf32>
    %125 = vector.shape_cast %122 : vector<1x4xf32> to vector<1x1x4xf32>
    tpu.vector_store %arg9[%c0_56, %c0_57, %c0_58], %125 {strides = array<i32>} : memref<1x1x4xf32, #tpu.memory_space<vmem>>, vector<1x1x4xf32>,
    return
  }
  func.func @transform_0(%arg0: i32) -> (i32, i32) {
    %c0_i32 = arith.constant 0 : i32
    %c0_i32_0 = arith.constant 0 : i32
    %c0_i32_1 = arith.constant 0 : i32
    return %c0_i32, %c0_i32_0 : i32, i32
  }
  func.func @transform_1(%arg0: i32) -> (i32, i32) {
    %c0_i32 = arith.constant 0 : i32
    %c0_i32_0 = arith.constant 0 : i32
    %c0_i32_1 = arith.constant 0 : i32
    return %c0_i32, %c0_i32_0 : i32, i32
  }
  func.func @transform_2(%arg0: i32) -> (i32, i32) {
    %c0_i32 = arith.constant 0 : i32
    %c0_i32_0 = arith.constant 0 : i32
    %c0_i32_1 = arith.constant 0 : i32
    return %c0_i32, %c0_i32_0 : i32, i32
  }
  func.func @transform_3(%arg0: i32) -> (i32, i32) {
    %c0_i32 = arith.constant 0 : i32
    %c0_i32_0 = arith.constant 0 : i32
    %c0_i32_1 = arith.constant 0 : i32
    return %c0_i32, %c0_i32_0 : i32, i32
  }
  func.func @transform_4(%arg0: i32) -> (i32, i32, i32) {
    %c0_i32 = arith.constant 0 : i32
    %c0_i32_0 = arith.constant 0 : i32
    %c0_i32_1 = arith.constant 0 : i32
    return %arg0, %c0_i32, %c0_i32_0 : i32, i32, i32
  }
  func.func @transform_5(%arg0: i32) -> (i32, i32, i32) {
    %c0_i32 = arith.constant 0 : i32
    %c0_i32_0 = arith.constant 0 : i32
    %c0_i32_1 = arith.constant 0 : i32
    return %arg0, %c0_i32, %c0_i32_0 : i32, i32, i32
  }
  func.func @transform_6(%arg0: i32) -> (i32, i32, i32) {
    %c0_i32 = arith.constant 0 : i32
    %c0_i32_0 = arith.constant 0 : i32
    %c0_i32_1 = arith.constant 0 : i32
    return %arg0, %c0_i32, %c0_i32_0 : i32, i32, i32
  }
  func.func @transform_7(%arg0: i32) -> (i32, i32, i32) {
    %c0_i32 = arith.constant 0 : i32
    %c0_i32_0 = arith.constant 0 : i32
    %c0_i32_1 = arith.constant 0 : i32
    return %arg0, %c0_i32, %c0_i32_0 : i32, i32, i32
  }
  func.func @transform_8(%arg0: i32) -> (i32, i32, i32) {
    %c0_i32 = arith.constant 0 : i32
    %c0_i32_0 = arith.constant 0 : i32
    %c0_i32_1 = arith.constant 0 : i32
    return %arg0, %c0_i32, %c0_i32_0 : i32, i32, i32
  }
}

</mosaic_0001>

<llo_original>
// kernel: tpu_custom_call.1
$region0: #{tpu_custom_call.1}
  #allocation0 [shape = 'u32[]', space=smem, size = 0x4, offset = 0x4, fixed_abs, tag = 'smem constant byte address 0x4 - core index']
  #allocation1 [shape = 'u32[144,128]{1,0:T(1,128)}', space=vmem, size = 0x12000, scoped, tag = 'internal scratch']
  %s0 = inlined_call_operand.hbm [shape: f32[8,64], index: 0, kind: input, shape index: {}]
  %s1 = inlined_call_operand.vmem [shape: f32[64,8], index: 1, kind: input, shape index: {}]
  %s2 = inlined_call_operand.vmem [shape: f32[1,64], index: 2, kind: input, shape index: {}]
  %s3 = inlined_call_operand.vmem [shape: f32[32,4], index: 3, kind: input, shape index: {}]
  %s4 = inlined_call_operand.vmem [shape: f32[8,8,64], index: 4, kind: input, shape index: {}]
  %s5 = inlined_call_operand.hbm [shape: f32[8,8,64], index: 5, kind: input, shape index: {}]
  %s6 = inlined_call_operand.vmem [shape: f32[8,8,64], index: 6, kind: input, shape index: {}]
  %s7 = inlined_call_operand.hbm [shape: f32[8,8,64], index: 7, kind: input, shape index: {}]
  %s8 = inlined_call_operand.hbm [shape: f32[2,1,4], index: 8, kind: output, shape index: {}]
  %s9 = sld [smem:[#allocation0]]
  $region77: #{tpu_custom_call.1} parent=0
    _
  %s11 = ssub.s32 1, %s9
  %s12 = scalar_select 0, %s11, %s9
  $region1: #{tpu_custom_call.1} parent=0
    #allocation2 [shape = 'u8[4096]{0}', space=vmem, size = 0x1000, scoped, tag = 'input window, operand 0, single buffered']
    #allocation3 [shape = 's32[2]{0}', space=sflag, size = 0x8, scoped, tag = 'scoped memory for tpu_custom_call.1']
    #allocation4 [shape = 's32[2]{0}', space=sflag, size = 0x8, scoped, tag = 'scoped memory for tpu_custom_call.1']
    #allocation5 [shape = 'u8[32768]{0}', space=vmem, size = 0x8000, scoped, tag = 'input window, operand 5']
    #allocation6 [shape = 's32[2]{0}', space=sflag, size = 0x8, scoped, tag = 'scoped memory for tpu_custom_call.1']
    #allocation7 [shape = 'u8[32768]{0}', space=vmem, size = 0x8000, scoped, tag = 'input window, operand 7']
    #allocation8 [shape = 'u8[1024]{0}', space=vmem, size = 0x400, scoped, tag = 'output window, operand 0']
    %13 = vsyncpa [#allocation3], 0
    %14 = vsyncpa [#allocation6], 0
    %s15 = scalar_lea.sflag [#allocation6], 1
    %16 = vsyncpa %s15, 0
    %17 = vsyncpa [#allocation4], 0
    %s18 = scalar_lea.sflag [#allocation4], 1
    %19 = vsyncpa %s18, 0
    loop: start=0, step=1, limit=4
    $region2: #{tpu_custom_call.1} parent=1 // loop_pre_header
      _
    $region3: #{tpu_custom_call.1} parent=1 // loop_header
      %s21 = sphi 0, %s25
      %p22 = scmp.ge.s32.totalorder %s21, 4
      %s29 = sphi 0, %s29
      %s31 = sphi 0, %s29
      %s32 = sphi 0, %s31
      %s46 = sphi 0, %s32
      %s50 = sphi 0, %s50
      %s52 = sphi 0, %s50
      %s53 = sphi 0, %s52
      %s67 = sphi 0, %s53
      %s71 = sphi 0, %s71
      %s73 = sphi 0, %s71
      %s74 = sphi 0, %s73
      %s88 = sphi 0, %s74
      %s92 = sphi 0, %s92
      %s94 = sphi 0, %s92
      %s95 = sphi 0, %s94
      %s109 = sphi 0, %s95
      %s115 = sphi 0, %s117
      %s118 = sphi 0, %s115
      %s119 = sphi 0, %s118
      %s135 = sphi 0, %s119
      %s141 = sphi 0, %s143
      %s144 = sphi 0, %s141
      %s145 = sphi 0, %s144
      %s161 = sphi 0, %s145
      %s167 = sphi 0, %s169
      %s170 = sphi 0, %s167
      %s171 = sphi 0, %s170
      %s187 = sphi 0, %s171
      %s193 = sphi 0, %s195
      %s196 = sphi 0, %s193
      %s197 = sphi 0, %s196
      %s213 = sphi 0, %s197
      %s219 = sphi 0, %s221
      %s222 = sphi 0, %s219
      %s223 = sphi 0, %s222
      %s239 = sphi 0, %s223
    $region4: #{tpu_custom_call.1} parent=1 // loop_header_branch
      %24 = sbr.rel (%p22) target = $region8
    $region5: #{tpu_custom_call.1} parent=1 // loop_body
      %s26 = ssub.s32 %s21, 1
      %s27 = ssub.s32 %s21, 2
      %s28 = sadd.s32 %s21, 1
      %s30 = sadd.s32 %s29, 1
      %p33 = scmp.eq.s32.totalorder %s21, 1
      %p34 = scmp.ne.s32.totalorder %s29, %s31
      %p35 = scmp.eq.s32.totalorder %s21, 0
      %p36 = por %p34, %p35
      %p37 = scmp.ne.s32.totalorder %s29, %s31
      %p38 = scmp.eq.s32.totalorder %s26, 1
      %p39 = por %p37, %p38
      %p40 = scmp.ne.s32.totalorder %s31, %s32
      %p41 = scmp.eq.s32.totalorder %s26, 0
      %p42 = por %p40, %p41
      %p43 = scmp.ne.s32.totalorder %s31, %s32
      %p44 = scmp.eq.s32.totalorder %s27, 1
      %p45 = por %p43, %p44
      %p47 = scmp.ne.s32.totalorder %s32, %s46
      %p48 = scmp.eq.s32.totalorder %s27, 0
      %p49 = por %p47, %p48
      %s51 = sadd.s32 %s50, 1
      %p54 = scmp.eq.s32.totalorder %s21, 1
      %p55 = scmp.ne.s32.totalorder %s50, %s52
      %p56 = scmp.eq.s32.totalorder %s21, 0
      %p57 = por %p55, %p56
      %p58 = scmp.ne.s32.totalorder %s50, %s52
      %p59 = scmp.eq.s32.totalorder %s26, 1
      %p60 = por %p58, %p59
      %p61 = scmp.ne.s32.totalorder %s52, %s53
      %p62 = scmp.eq.s32.totalorder %s26, 0
      %p63 = por %p61, %p62
      %p64 = scmp.ne.s32.totalorder %s52, %s53
      %p65 = scmp.eq.s32.totalorder %s27, 1
      %p66 = por %p64, %p65
      %p68 = scmp.ne.s32.totalorder %s53, %s67
      %p69 = scmp.eq.s32.totalorder %s27, 0
      %p70 = por %p68, %p69
      %s72 = sadd.s32 %s71, 1
      %p75 = scmp.eq.s32.totalorder %s21, 1
      %p76 = scmp.ne.s32.totalorder %s71, %s73
      %p77 = scmp.eq.s32.totalorder %s21, 0
      %p78 = por %p76, %p77
      %p79 = scmp.ne.s32.totalorder %s71, %s73
      %p80 = scmp.eq.s32.totalorder %s26, 1
      %p81 = por %p79, %p80
      %p82 = scmp.ne.s32.totalorder %s73, %s74
      %p83 = scmp.eq.s32.totalorder %s26, 0
      %p84 = por %p82, %p83
      %p85 = scmp.ne.s32.totalorder %s73, %s74
      %p86 = scmp.eq.s32.totalorder %s27, 1
      %p87 = por %p85, %p86
      %p89 = scmp.ne.s32.totalorder %s74, %s88
      %p90 = scmp.eq.s32.totalorder %s27, 0
      %p91 = por %p89, %p90
      %s93 = sadd.s32 %s92, 1
      %p96 = scmp.eq.s32.totalorder %s21, 1
      %p97 = scmp.ne.s32.totalorder %s92, %s94
      %p98 = scmp.eq.s32.totalorder %s21, 0
      %p99 = por %p97, %p98
      %p100 = scmp.ne.s32.totalorder %s92, %s94
      %p101 = scmp.eq.s32.totalorder %s26, 1
      %p102 = por %p100, %p101
      %p103 = scmp.ne.s32.totalorder %s94, %s95
      %p104 = scmp.eq.s32.totalorder %s26, 0
      %p105 = por %p103, %p104
      %p106 = scmp.ne.s32.totalorder %s94, %s95
      %p107 = scmp.eq.s32.totalorder %s27, 1
      %p108 = por %p106, %p107
      %p110 = scmp.ne.s32.totalorder %s95, %s109
      %p111 = scmp.eq.s32.totalorder %s27, 0
      %p112 = por %p110, %p111
      %s113 = ssub.s32 %s21, %s28
      %p114 = scmp.eq.s32.totalorder %s113, 0
      %s116 = sadd.s32 %s115, 1
      %s117 = scalar_select %p114, %s115, %s116
      %p120 = pneg %p114
      %p121 = scmp.eq.s32.totalorder %s21, 1
      %p122 = por %p120, %p121
      %p123 = scmp.ne.s32.totalorder %s115, %s118
      %p124 = scmp.eq.s32.totalorder %s21, 0
      %p125 = por %p123, %p124
      %p126 = scmp.ne.s32.totalorder %s115, %s118
      %p127 = scmp.eq.s32.totalorder %s26, 1
      %p128 = por %p126, %p127
      %p129 = scmp.ne.s32.totalorder %s118, %s119
      %p130 = scmp.eq.s32.totalorder %s26, 0
      %p131 = por %p129, %p130
      %p132 = scmp.ne.s32.totalorder %s118, %s119
      %p133 = scmp.eq.s32.totalorder %s27, 1
      %p134 = por %p132, %p133
      %p136 = scmp.ne.s32.totalorder %s119, %s135
      %p137 = scmp.eq.s32.totalorder %s27, 0
      %p138 = por %p136, %p137
      %s139 = ssub.s32 %s21, %s28
      %p140 = scmp.eq.s32.totalorder %s139, 0
      %s142 = sadd.s32 %s141, 1
      %s143 = scalar_select %p140, %s141, %s142
      %p146 = pneg %p140
      %p147 = scmp.eq.s32.totalorder %s21, 1
      %p148 = por %p146, %p147
      %p149 = scmp.ne.s32.totalorder %s141, %s144
      %p150 = scmp.eq.s32.totalorder %s21, 0
      %p151 = por %p149, %p150
      %p152 = scmp.ne.s32.totalorder %s141, %s144
      %p153 = scmp.eq.s32.totalorder %s26, 1
      %p154 = por %p152, %p153
      %p155 = scmp.ne.s32.totalorder %s144, %s145
      %p156 = scmp.eq.s32.totalorder %s26, 0
      %p157 = por %p155, %p156
      %p158 = scmp.ne.s32.totalorder %s144, %s145
      %p159 = scmp.eq.s32.totalorder %s27, 1
      %p160 = por %p158, %p159
      %p162 = scmp.ne.s32.totalorder %s145, %s161
      %p163 = scmp.eq.s32.totalorder %s27, 0
      %p164 = por %p162, %p163
      %s165 = ssub.s32 %s21, %s28
      %p166 = scmp.eq.s32.totalorder %s165, 0
      %s168 = sadd.s32 %s167, 1
      %s169 = scalar_select %p166, %s167, %s168
      %p172 = pneg %p166
      %p173 = scmp.eq.s32.totalorder %s21, 1
      %p174 = por %p172, %p173
      %p175 = scmp.ne.s32.totalorder %s167, %s170
      %p176 = scmp.eq.s32.totalorder %s21, 0
      %p177 = por %p175, %p176
      %p178 = scmp.ne.s32.totalorder %s167, %s170
      %p179 = scmp.eq.s32.totalorder %s26, 1
      %p180 = por %p178, %p179
      %p181 = scmp.ne.s32.totalorder %s170, %s171
      %p182 = scmp.eq.s32.totalorder %s26, 0
      %p183 = por %p181, %p182
      %p184 = scmp.ne.s32.totalorder %s170, %s171
      %p185 = scmp.eq.s32.totalorder %s27, 1
      %p186 = por %p184, %p185
      %p188 = scmp.ne.s32.totalorder %s171, %s187
      %p189 = scmp.eq.s32.totalorder %s27, 0
      %p190 = por %p188, %p189
      %s191 = ssub.s32 %s21, %s28
      %p192 = scmp.eq.s32.totalorder %s191, 0
      %s194 = sadd.s32 %s193, 1
      %s195 = scalar_select %p192, %s193, %s194
      %p198 = pneg %p192
      %p199 = scmp.eq.s32.totalorder %s21, 1
      %p200 = por %p198, %p199
      %p201 = scmp.ne.s32.totalorder %s193, %s196
      %p202 = scmp.eq.s32.totalorder %s21, 0
      %p203 = por %p201, %p202
      %p204 = scmp.ne.s32.totalorder %s193, %s196
      %p205 = scmp.eq.s32.totalorder %s26, 1
      %p206 = por %p204, %p205
      %p207 = scmp.ne.s32.totalorder %s196, %s197
      %p208 = scmp.eq.s32.totalorder %s26, 0
      %p209 = por %p207, %p208
      %p210 = scmp.ne.s32.totalorder %s196, %s197
      %p211 = scmp.eq.s32.totalorder %s27, 1
      %p212 = por %p210, %p211
      %p214 = scmp.ne.s32.totalorder %s197, %s213
      %p215 = scmp.eq.s32.totalorder %s27, 0
      %p216 = por %p214, %p215
      %s217 = ssub.s32 %s21, %s28
      %p218 = scmp.eq.s32.totalorder %s217, 0
      %s220 = sadd.s32 %s219, 1
      %s221 = scalar_select %p218, %s219, %s220
      %p224 = pneg %p218
      %p225 = scmp.eq.s32.totalorder %s21, 1
      %p226 = por %p224, %p225
      %p227 = scmp.ne.s32.totalorder %s219, %s222
      %p228 = scmp.eq.s32.totalorder %s21, 0
      %p229 = por %p227, %p228
      %p230 = scmp.ne.s32.totalorder %s219, %s222
      %p231 = scmp.eq.s32.totalorder %s26, 1
      %p232 = por %p230, %p231
      %p233 = scmp.ne.s32.totalorder %s222, %s223
      %p234 = scmp.eq.s32.totalorder %s26, 0
      %p235 = por %p233, %p234
      %p236 = scmp.ne.s32.totalorder %s222, %s223
      %p237 = scmp.eq.s32.totalorder %s27, 1
      %p238 = por %p236, %p237
      %p240 = scmp.ne.s32.totalorder %s223, %s239
      %p241 = scmp.eq.s32.totalorder %s27, 0
      %p242 = por %p240, %p241
      %p243 = scmp.le.s32.totalorder 1, %s21
      %p244 = scmp.lt.s32.totalorder %s21, 3
      %p245 = pnand %p243, %p244
      %p246 = pneg %p245
      // Predicated region
      $region9: #{tpu_custom_call.1} parent=5 // pred_check
        _
      $region10: #{tpu_custom_call.1} parent=5 // pred_check_branch
        %248 = sbr.rel (%p245) target = $region12
      $region11: #{tpu_custom_call.1} parent=5 // pred_region
        %s249 = ssub.s32 %s21, 1
        // Predicated region
        $region13: #{tpu_custom_call.1} parent=11 // pred_check
          %p250 = pneg %p42
        $region14: #{tpu_custom_call.1} parent=11 // pred_check_branch
          %252 = sbr.rel (%p250) target = $region16
        $region15: #{tpu_custom_call.1} parent=11 // pred_region
          %s254 = ssub.s32 128, 128
          %255 = vsyncadd [#allocation3], %s254
          %s257 = sshll.u32 [#allocation2], 4
          %s258 = int_to_ptr.vmem [resolvable:$true] %s257
          %260 = dma.hbm_to_vmem [thread:$0]  %s0, 128, %s258, [#allocation3]
        $region16: #{tpu_custom_call.1} parent=11 // pred_fallthru
          _
        // Predicated region
        $region17: #{tpu_custom_call.1} parent=11 // pred_check
          %p261 = pneg %p63
        $region18: #{tpu_custom_call.1} parent=11 // pred_check_branch
          %263 = sbr.rel (%p261) target = $region20
        $region19: #{tpu_custom_call.1} parent=11 // pred_region
          _
        $region20: #{tpu_custom_call.1} parent=11 // pred_fallthru
          _
        // Predicated region
        $region21: #{tpu_custom_call.1} parent=11 // pred_check
          %p264 = pneg %p84
        $region22: #{tpu_custom_call.1} parent=11 // pred_check_branch
          %266 = sbr.rel (%p264) target = $region24
        $region23: #{tpu_custom_call.1} parent=11 // pred_region
          _
        $region24: #{tpu_custom_call.1} parent=11 // pred_fallthru
          _
        // Predicated region
        $region25: #{tpu_custom_call.1} parent=11 // pred_check
          %p267 = pneg %p105
        $region26: #{tpu_custom_call.1} parent=11 // pred_check_branch
          %269 = sbr.rel (%p267) target = $region28
        $region27: #{tpu_custom_call.1} parent=11 // pred_region
          _
        $region28: #{tpu_custom_call.1} parent=11 // pred_fallthru
          _
      $region12: #{tpu_custom_call.1} parent=5 // pred_fallthru
        _
      %p270 = scmp.lt.s32.totalorder %s21, 2
      // Predicated region
      $region29: #{tpu_custom_call.1} parent=5 // pred_check
        %p271 = pneg %p270
      $region30: #{tpu_custom_call.1} parent=5 // pred_check_branch
        %273 = sbr.rel (%p271) target = $region32
      $region31: #{tpu_custom_call.1} parent=5 // pred_region
        // Predicated region
        $region33: #{tpu_custom_call.1} parent=31 // pred_check
          %p274 = pneg %p125
        $region34: #{tpu_custom_call.1} parent=31 // pred_check_branch
          %276 = sbr.rel (%p274) target = $region36
        $region35: #{tpu_custom_call.1} parent=31 // pred_region
          %s277 = smul.u32 4, %s21
          %p278 = scmp.lt.s32.totalorder %s277, 7
          %s279 = scalar_select %p278, %s277, 7
          %s280 = smul.addr %s279, 8
          %s281 = scalar_lea.vmem %s4, %s280
          %s282 = smul.u32 4, %s21
        $region36: #{tpu_custom_call.1} parent=31 // pred_fallthru
          _
        // Predicated region
        $region37: #{tpu_custom_call.1} parent=31 // pred_check
          %p283 = pneg %p151
        $region38: #{tpu_custom_call.1} parent=31 // pred_check_branch
          %285 = sbr.rel (%p283) target = $region40
        $region39: #{tpu_custom_call.1} parent=31 // pred_region
          %s286 = sand.u32 %s21, 1
          %s287 = scalar_lea.sflag [#allocation6], %s286
          %s288 = sand.u32 %s141, 1
          %s289 = smul.addr %s288, 32
          %s290 = scalar_lea.vmem [#allocation5], %s289
          %s291 = smul.u32 4, %s21
          %s293 = ssub.s32 512, 512
          %294 = vsyncadd %s287, %s293
          %s295 = smul.addr %s291, 128
          %s296 = scalar_lea.hbm %s5, %s295
          %s297 = sshll.u32 %s290, 4
          %s298 = int_to_ptr.vmem [resolvable:$true] %s297
          %303 = dma.hbm_to_vmem [thread:$0]  %s296, 512, %s298, %s287, 128, 128, 8
        $region40: #{tpu_custom_call.1} parent=31 // pred_fallthru
          _
        // Predicated region
        $region41: #{tpu_custom_call.1} parent=31 // pred_check
          %p304 = pneg %p177
        $region42: #{tpu_custom_call.1} parent=31 // pred_check_branch
          %306 = sbr.rel (%p304) target = $region44
        $region43: #{tpu_custom_call.1} parent=31 // pred_region
          %s307 = smul.u32 4, %s21
          %p308 = scmp.lt.s32.totalorder %s307, 7
          %s309 = scalar_select %p308, %s307, 7
          %s310 = smul.addr %s309, 8
          %s311 = scalar_lea.vmem %s6, %s310
          %s312 = smul.u32 4, %s21
        $region44: #{tpu_custom_call.1} parent=31 // pred_fallthru
          _
        // Predicated region
        $region45: #{tpu_custom_call.1} parent=31 // pred_check
          %p313 = pneg %p203
        $region46: #{tpu_custom_call.1} parent=31 // pred_check_branch
          %315 = sbr.rel (%p313) target = $region48
        $region47: #{tpu_custom_call.1} parent=31 // pred_region
          %s316 = sand.u32 %s21, 1
          %s317 = scalar_lea.sflag [#allocation6], %s316
          %s318 = sand.u32 %s193, 1
          %s319 = smul.addr %s318, 32
          %s320 = scalar_lea.vmem [#allocation7], %s319
          %s321 = smul.u32 4, %s21
          %s323 = ssub.s32 512, 512
          %324 = vsyncadd %s317, %s323
          %s325 = smul.addr %s321, 128
          %s326 = scalar_lea.hbm %s7, %s325
          %s327 = sshll.u32 %s320, 4
          %s328 = int_to_ptr.vmem [resolvable:$true] %s327
          %333 = dma.hbm_to_vmem [thread:$0]  %s326, 512, %s328, %s317, 128, 128, 8
        $region48: #{tpu_custom_call.1} parent=31 // pred_fallthru
          _
      $region32: #{tpu_custom_call.1} parent=5 // pred_fallthru
        _
      %p334 = scmp.le.s32.totalorder 1, %s21
      %p335 = scmp.lt.s32.totalorder %s21, 3
      %p336 = pnand %p334, %p335
      %p337 = pneg %p336
      // Predicated region
      $region49: #{tpu_custom_call.1} parent=5 // pred_check
        _
      $region50: #{tpu_custom_call.1} parent=5 // pred_check_branch
        %339 = sbr.rel (%p336) target = $region52
      $region51: #{tpu_custom_call.1} parent=5 // pred_region
        %s340 = ssub.s32 %s21, 1
        // Predicated region
        $region53: #{tpu_custom_call.1} parent=51 // pred_check
          %p341 = pneg %p42
        $region54: #{tpu_custom_call.1} parent=51 // pred_check_branch
          %343 = sbr.rel (%p341) target = $region56
        $region55: #{tpu_custom_call.1} parent=51 // pred_region
          %344 = dma.done [#allocation3], 128
        $region56: #{tpu_custom_call.1} parent=51 // pred_fallthru
          _
        %s345 = sand.u32 %s26, 1
        %s346 = scalar_lea.sflag [#allocation6], %s345
        %s347 = sand.u32 %s144, 1
        %s348 = smul.addr %s347, 32
        %s349 = scalar_lea.vmem [#allocation5], %s348
        // Predicated region
        $region57: #{tpu_custom_call.1} parent=51 // pred_check
          %p350 = pneg %p157
        $region58: #{tpu_custom_call.1} parent=51 // pred_check_branch
          %352 = sbr.rel (%p350) target = $region60
        $region59: #{tpu_custom_call.1} parent=51 // pred_region
          %353 = dma.done %s346, 512
        $region60: #{tpu_custom_call.1} parent=51 // pred_fallthru
          _
        %s354 = sand.u32 %s26, 1
        %s355 = scalar_lea.sflag [#allocation6], %s354
        %s356 = sand.u32 %s196, 1
        %s357 = smul.addr %s356, 32
        %s358 = scalar_lea.vmem [#allocation7], %s357
        // Predicated region
        $region61: #{tpu_custom_call.1} parent=51 // pred_check
          %p359 = pneg %p209
        $region62: #{tpu_custom_call.1} parent=51 // pred_check_branch
          %361 = sbr.rel (%p359) target = $region64
        $region63: #{tpu_custom_call.1} parent=51 // pred_region
          %362 = dma.done %s355, 512
        $region64: #{tpu_custom_call.1} parent=51 // pred_fallthru
          _
        %p363 = pneg %p42
        %p364 = pneg %p39
        %p365 = pneg %p63
        %p366 = pneg %p60
        %p367 = pneg %p84
        %p368 = pneg %p81
        %p369 = pneg %p105
        %p370 = pneg %p102
        %s371 = smul.u32 4, %s26
        %p372 = scmp.lt.s32.totalorder %s371, 7
        %s373 = scalar_select %p372, %s371, 7
        %s374 = smul.addr %s373, 8
        %s375 = scalar_lea.vmem %s4, %s374
        %p376 = pneg %p131
        %p377 = pneg %p128
        %s378 = sand.u32 %s26, 1
        %s379 = scalar_lea.sflag [#allocation6], %s378
        %s380 = sand.u32 %s144, 1
        %s381 = smul.addr %s380, 32
        %s382 = scalar_lea.vmem [#allocation5], %s381
        %p383 = pneg %p157
        %p384 = pneg %p154
        %s385 = smul.u32 4, %s26
        %p386 = scmp.lt.s32.totalorder %s385, 7
        %s387 = scalar_select %p386, %s385, 7
        %s388 = smul.addr %s387, 8
        %s389 = scalar_lea.vmem %s6, %s388
        %p390 = pneg %p183
        %p391 = pneg %p180
        %s392 = sand.u32 %s26, 1
        %s393 = scalar_lea.sflag [#allocation6], %s392
        %s394 = sand.u32 %s196, 1
        %s395 = smul.addr %s394, 32
        %s396 = scalar_lea.vmem [#allocation7], %s395
        %p397 = pneg %p209
        %p398 = pneg %p206
        %p399 = pneg %p235
        %p400 = pneg %p232
        %s401 = sand.u32 %s222, 1
        %s402 = scalar_lea.sflag [#allocation4], %s401
        %s403 = sand.u32 %s222, 1
        %s404 = scalar_lea.vmem [#allocation8], %s403
        %s405 = smul.u32 4, %s26
        %p406 = scmp.lt.s32.totalorder %s405, 7
        %s407 = scalar_select %p406, %s405, 7
        %s408 = smul.addr %s407, 8
        %s409 = scalar_lea.vmem %s4, %s408
        %s410 = smul.u32 4, %s26
        %s411 = smul.u32 4, %s26
        %s412 = smul.u32 4, %s26
        %p413 = scmp.lt.s32.totalorder %s412, 7
        %s414 = scalar_select %p413, %s412, 7
        %s415 = smul.addr %s414, 8
        %s416 = scalar_lea.vmem %s6, %s415
        %s417 = smul.u32 4, %s26
        %s418 = smul.u32 4, %s26
        %v419 = vld [vmem:[%s409] sm:$0xff]
        %v420 = vld [vmem:[%s409 + $0x8] sm:$0xff]
        %v421 = vld [vmem:[%s409 + $0x10] sm:$0xff]
        %v422 = vld [vmem:[%s409 + $0x18] sm:$0xff]
        %v423 = vld [vmem:[%s349] sm:$0xff]
        %v424 = vld [vmem:[%s349 + $0x8] sm:$0xff]
        %v425 = vld [vmem:[%s349 + $0x10] sm:$0xff]
        %v426 = vld [vmem:[%s349 + $0x18] sm:$0xff]
        %v427 = vld [vmem:[%s416] sm:$0xff]
        %v428 = vld [vmem:[%s416 + $0x8] sm:$0xff]
        %v429 = vld [vmem:[%s416 + $0x10] sm:$0xff]
        %v430 = vld [vmem:[%s416 + $0x18] sm:$0xff]
        %v431 = vld [vmem:[%s358] sm:$0xff]
        %v432 = vld [vmem:[%s358 + $0x8] sm:$0xff]
        %v433 = vld [vmem:[%s358 + $0x10] sm:$0xff]
        %v434 = vld [vmem:[%s358 + $0x18] sm:$0xff]
        %v435 = vmul.f32 %v419, %v419
        %v436 = vmul.f32 %v420, %v420
        %v437 = vmul.f32 %v421, %v421
        %v438 = vmul.f32 %v422, %v422
        %v439 = vmul.f32 %v423, %v423
        %v440 = vmul.f32 %v424, %v424
        %v441 = vmul.f32 %v425, %v425
        %v442 = vmul.f32 %v426, %v426
        %vm443 = vcmask 523264
        %v445 = vsel %vm443, %v423, 0
        %v448 = vsel %vm443, %v427, 0
        %v451 = vsel %vm443, 1.0, 0
        %v454 = vsel %vm443, %v419, 0
        %v457 = vsel %vm443, %v431, 0
        %v460 = vsel %vm443, %v435, 0
        %v463 = vsel %vm443, %v439, 0
        %465 = vmatprep.subr.mxu0 0.0
        %466 = vmatpush1.xpose.msra.mxu0 %v454
        %467 = vmatprep.subr.mxu0 0.0
        %468 = vmatpush1.xpose.msra.mxu0 %v457
        %469 = vmatprep.subr.mxu0 0.0
        %470 = vmatpush1.xpose.msra.mxu0 %v460
        %471 = vmatprep.subr.mxu0 0.0
        %472 = vmatpush1.xpose.msra.mxu0 %v463
        %473 = vmatprep.subr.mxu0 0.0
        %474 = vmatpush1.xpose.msra.mxu0 0.0
        %475 = vmatprep.subr.mxu0 0.0
        %476 = vmatpush1.xpose.msra.mxu0 0.0
        %477 = vmatprep.subr.mxu0 0.0
        %478 = vmatpush1.xpose.msra.mxu0 0.0
        %479 = vmatprep.subr.mxu0 0.0
        %480 = vmatpush1.xpose.msra.mxu0 0.0
        %481 = vmatprep.subr.mxu0 0.0
        %482 = vmatpush1.xpose.msra.mxu0 0.0
        %483 = vmatprep.subr.mxu0 0.0
        %484 = vmatpush1.xpose.msra.mxu0 0.0
        %485 = vmatprep.subr.mxu0 0.0
        %486 = vmatpush1.xpose.msra.mxu0 0.0
        %487 = vmatprep.subr.mxu0 0.0
        %488 = vmatpush1.xpose.msra.mxu0 0.0
        %489 = vmatprep.subr.mxu0 0.0
        %490 = vmatpush1.xpose.msra.mxu0 0.0
        %491 = vmatprep.subr.mxu0 0.0
        %492 = vmatpush1.xpose.msra.mxu0 0.0
        %493 = vmatprep.subr.mxu0 0.0
        %494 = vmatpush1.xpose.msra.mxu0 0.0
        %495 = vmatprep.subr.mxu0 0.0
        %496 = vmatpush1.xpose.msra.mxu0 0.0
        %497 = vmatprep.subr.mxu0 0.0
        %498 = vmatpush1.xpose.msra.mxu0 0.0
        %499 = vmatprep.subr.mxu0 0.0
        %500 = vmatpush1.xpose.msra.mxu0 0.0
        %501 = vmatprep.subr.mxu0 0.0
        %502 = vmatpush1.xpose.msra.mxu0 0.0
        %503 = vmatprep.subr.mxu0 0.0
        %504 = vmatpush1.xpose.msra.mxu0 0.0
        %505 = vmatprep.subr.mxu0 0.0
        %506 = vmatpush1.xpose.msra.mxu0 0.0
        %507 = vmatprep.subr.mxu0 0.0
        %508 = vmatpush1.xpose.msra.mxu0 0.0
        %509 = vmatprep.subr.mxu0 0.0
        %510 = vmatpush1.xpose.msra.mxu0 0.0
        %511 = vmatprep.subr.mxu0 0.0
        %512 = vmatpush1.xpose.msra.mxu0 0.0
        %513 = vmatprep.subr.mxu0 0.0
        %514 = vmatpush1.xpose.msra.mxu0 0.0
        %515 = vmatprep.subr.mxu0 0.0
        %516 = vmatpush1.xpose.msra.mxu0 0.0
        %517 = vmatprep.subr.mxu0 0.0
        %518 = vmatpush1.xpose.msra.mxu0 0.0
        %519 = vmatprep.subr.mxu0 0.0
        %520 = vmatpush1.xpose.msra.mxu0 0.0
        %521 = vmatprep.subr.mxu0 0.0
        %522 = vmatpush1.xpose.msra.mxu0 0.0
        %523 = vmatprep.subr.mxu0 0.0
        %524 = vmatpush1.xpose.msra.mxu0 0.0
        %525 = vmatprep.subr.mxu0 0.0
        %526 = vmatpush1.xpose.msra.mxu0 0.0
        %527 = vmatprep.subr.mxu0 0.0
        %528 = vmatpush1.xpose.msra.mxu0 0.0
        %529 = vmatprep.mubr.f32.mxu0 0.0
        %530 = vmatmul.mubr.f32.gmra.mrb[0].mxu0 %v445
        %v531 = vpop.f32.mrb[0].mxu0
        %v532 = vadd.f32 0.0, %v531
        %v533 = vpop.f32.mrb[0].mxu0
        %534 = vmatprep.mubr.f32.mxu0 0.0
        %535 = vmatmul.mubr.f32.gmra.mrb[0].mxu0 %v448
        %v536 = vpop.f32.mrb[0].mxu0
        %v537 = vadd.f32 0.0, %v536
        %v538 = vpop.f32.mrb[0].mxu0
        %539 = vmatprep.mubr.f32.mxu0 0.0
        %540 = vmatmul.mubr.f32.gmra.mrb[0].mxu0 %v451
        %v541 = vpop.f32.mrb[0].mxu0
        %v542 = vadd.f32 0.0, %v541
        %v543 = vpop.f32.mrb[0].mxu0
        %544 = vdwg.mxu0
        %v546 = vsel %vm443, %v424, 0
        %v549 = vsel %vm443, %v428, 0
        %v552 = vsel %vm443, %v420, 0
        %v555 = vsel %vm443, %v432, 0
        %v558 = vsel %vm443, %v436, 0
        %v561 = vsel %vm443, %v440, 0
        %563 = vmatprep.subr.mxu0 0.0
        %564 = vmatpush1.xpose.msra.mxu0 %v552
        %565 = vmatprep.subr.mxu0 0.0
        %566 = vmatpush1.xpose.msra.mxu0 %v555
        %567 = vmatprep.subr.mxu0 0.0
        %568 = vmatpush1.xpose.msra.mxu0 %v558
        %569 = vmatprep.subr.mxu0 0.0
        %570 = vmatpush1.xpose.msra.mxu0 %v561
        %571 = vmatprep.subr.mxu0 0.0
        %572 = vmatpush1.xpose.msra.mxu0 0.0
        %573 = vmatprep.subr.mxu0 0.0
        %574 = vmatpush1.xpose.msra.mxu0 0.0
        %575 = vmatprep.subr.mxu0 0.0
        %576 = vmatpush1.xpose.msra.mxu0 0.0
        %577 = vmatprep.subr.mxu0 0.0
        %578 = vmatpush1.xpose.msra.mxu0 0.0
        %579 = vmatprep.subr.mxu0 0.0
        %580 = vmatpush1.xpose.msra.mxu0 0.0
        %581 = vmatprep.subr.mxu0 0.0
        %582 = vmatpush1.xpose.msra.mxu0 0.0
        %583 = vmatprep.subr.mxu0 0.0
        %584 = vmatpush1.xpose.msra.mxu0 0.0
        %585 = vmatprep.subr.mxu0 0.0
        %586 = vmatpush1.xpose.msra.mxu0 0.0
        %587 = vmatprep.subr.mxu0 0.0
        %588 = vmatpush1.xpose.msra.mxu0 0.0
        %589 = vmatprep.subr.mxu0 0.0
        %590 = vmatpush1.xpose.msra.mxu0 0.0
        %591 = vmatprep.subr.mxu0 0.0
        %592 = vmatpush1.xpose.msra.mxu0 0.0
        %593 = vmatprep.subr.mxu0 0.0
        %594 = vmatpush1.xpose.msra.mxu0 0.0
        %595 = vmatprep.subr.mxu0 0.0
        %596 = vmatpush1.xpose.msra.mxu0 0.0
        %597 = vmatprep.subr.mxu0 0.0
        %598 = vmatpush1.xpose.msra.mxu0 0.0
        %599 = vmatprep.subr.mxu0 0.0
        %600 = vmatpush1.xpose.msra.mxu0 0.0
        %601 = vmatprep.subr.mxu0 0.0
        %602 = vmatpush1.xpose.msra.mxu0 0.0
        %603 = vmatprep.subr.mxu0 0.0
        %604 = vmatpush1.xpose.msra.mxu0 0.0
        %605 = vmatprep.subr.mxu0 0.0
        %606 = vmatpush1.xpose.msra.mxu0 0.0
        %607 = vmatprep.subr.mxu0 0.0
        %608 = vmatpush1.xpose.msra.mxu0 0.0
        %609 = vmatprep.subr.mxu0 0.0
        %610 = vmatpush1.xpose.msra.mxu0 0.0
        %611 = vmatprep.subr.mxu0 0.0
        %612 = vmatpush1.xpose.msra.mxu0 0.0
        %613 = vmatprep.subr.mxu0 0.0
        %614 = vmatpush1.xpose.msra.mxu0 0.0
        %615 = vmatprep.subr.mxu0 0.0
        %616 = vmatpush1.xpose.msra.mxu0 0.0
        %617 = vmatprep.subr.mxu0 0.0
        %618 = vmatpush1.xpose.msra.mxu0 0.0
        %619 = vmatprep.subr.mxu0 0.0
        %620 = vmatpush1.xpose.msra.mxu0 0.0
        %621 = vmatprep.subr.mxu0 0.0
        %622 = vmatpush1.xpose.msra.mxu0 0.0
        %623 = vmatprep.subr.mxu0 0.0
        %624 = vmatpush1.xpose.msra.mxu0 0.0
        %625 = vmatprep.subr.mxu0 0.0
        %626 = vmatpush1.xpose.msra.mxu0 0.0
        %627 = vmatprep.mubr.f32.mxu0 0.0
        %628 = vmatmul.mubr.f32.gmra.mrb[0].mxu0 %v546
        %v629 = vpop.f32.mrb[0].mxu0
        %v630 = vadd.f32 0.0, %v629
        %v631 = vpop.f32.mrb[0].mxu0
        %632 = vmatprep.mubr.f32.mxu0 0.0
        %633 = vmatmul.mubr.f32.gmra.mrb[0].mxu0 %v549
        %v634 = vpop.f32.mrb[0].mxu0
        %v635 = vadd.f32 0.0, %v634
        %v636 = vpop.f32.mrb[0].mxu0
        %637 = vmatprep.mubr.f32.mxu0 0.0
        %638 = vmatmul.mubr.f32.gmra.mrb[0].mxu0 %v451
        %v639 = vpop.f32.mrb[0].mxu0
        %v640 = vadd.f32 0.0, %v639
        %v641 = vpop.f32.mrb[0].mxu0
        %642 = vdwg.mxu0
        %v644 = vsel %vm443, %v425, 0
        %v647 = vsel %vm443, %v429, 0
        %v650 = vsel %vm443, %v421, 0
        %v653 = vsel %vm443, %v433, 0
        %v656 = vsel %vm443, %v437, 0
        %v659 = vsel %vm443, %v441, 0
        %661 = vmatprep.subr.mxu0 0.0
        %662 = vmatpush1.xpose.msra.mxu0 %v650
        %663 = vmatprep.subr.mxu0 0.0
        %664 = vmatpush1.xpose.msra.mxu0 %v653
        %665 = vmatprep.subr.mxu0 0.0
        %666 = vmatpush1.xpose.msra.mxu0 %v656
        %667 = vmatprep.subr.mxu0 0.0
        %668 = vmatpush1.xpose.msra.mxu0 %v659
        %669 = vmatprep.subr.mxu0 0.0
        %670 = vmatpush1.xpose.msra.mxu0 0.0
        %671 = vmatprep.subr.mxu0 0.0
        %672 = vmatpush1.xpose.msra.mxu0 0.0
        %673 = vmatprep.subr.mxu0 0.0
        %674 = vmatpush1.xpose.msra.mxu0 0.0
        %675 = vmatprep.subr.mxu0 0.0
        %676 = vmatpush1.xpose.msra.mxu0 0.0
        %677 = vmatprep.subr.mxu0 0.0
        %678 = vmatpush1.xpose.msra.mxu0 0.0
        %679 = vmatprep.subr.mxu0 0.0
        %680 = vmatpush1.xpose.msra.mxu0 0.0
        %681 = vmatprep.subr.mxu0 0.0
        %682 = vmatpush1.xpose.msra.mxu0 0.0
        %683 = vmatprep.subr.mxu0 0.0
        %684 = vmatpush1.xpose.msra.mxu0 0.0
        %685 = vmatprep.subr.mxu0 0.0
        %686 = vmatpush1.xpose.msra.mxu0 0.0
        %687 = vmatprep.subr.mxu0 0.0
        %688 = vmatpush1.xpose.msra.mxu0 0.0
        %689 = vmatprep.subr.mxu0 0.0
        %690 = vmatpush1.xpose.msra.mxu0 0.0
        %691 = vmatprep.subr.mxu0 0.0
        %692 = vmatpush1.xpose.msra.mxu0 0.0
        %693 = vmatprep.subr.mxu0 0.0
        %694 = vmatpush1.xpose.msra.mxu0 0.0
        %695 = vmatprep.subr.mxu0 0.0
        %696 = vmatpush1.xpose.msra.mxu0 0.0
        %697 = vmatprep.subr.mxu0 0.0
        %698 = vmatpush1.xpose.msra.mxu0 0.0
        %699 = vmatprep.subr.mxu0 0.0
        %700 = vmatpush1.xpose.msra.mxu0 0.0
        %701 = vmatprep.subr.mxu0 0.0
        %702 = vmatpush1.xpose.msra.mxu0 0.0
        %703 = vmatprep.subr.mxu0 0.0
        %704 = vmatpush1.xpose.msra.mxu0 0.0
        %705 = vmatprep.subr.mxu0 0.0
        %706 = vmatpush1.xpose.msra.mxu0 0.0
        %707 = vmatprep.subr.mxu0 0.0
        %708 = vmatpush1.xpose.msra.mxu0 0.0
        %709 = vmatprep.subr.mxu0 0.0
        %710 = vmatpush1.xpose.msra.mxu0 0.0
        %711 = vmatprep.subr.mxu0 0.0
        %712 = vmatpush1.xpose.msra.mxu0 0.0
        %713 = vmatprep.subr.mxu0 0.0
        %714 = vmatpush1.xpose.msra.mxu0 0.0
        %715 = vmatprep.subr.mxu0 0.0
        %716 = vmatpush1.xpose.msra.mxu0 0.0
        %717 = vmatprep.subr.mxu0 0.0
        %718 = vmatpush1.xpose.msra.mxu0 0.0
        %719 = vmatprep.subr.mxu0 0.0
        %720 = vmatpush1.xpose.msra.mxu0 0.0
        %721 = vmatprep.subr.mxu0 0.0
        %722 = vmatpush1.xpose.msra.mxu0 0.0
        %723 = vmatprep.subr.mxu0 0.0
        %724 = vmatpush1.xpose.msra.mxu0 0.0
        %725 = vmatprep.mubr.f32.mxu0 0.0
        %726 = vmatmul.mubr.f32.gmra.mrb[0].mxu0 %v644
        %v727 = vpop.f32.mrb[0].mxu0
        %v728 = vadd.f32 0.0, %v727
        %v729 = vpop.f32.mrb[0].mxu0
        %730 = vmatprep.mubr.f32.mxu0 0.0
        %731 = vmatmul.mubr.f32.gmra.mrb[0].mxu0 %v647
        %v732 = vpop.f32.mrb[0].mxu0
        %v733 = vadd.f32 0.0, %v732
        %v734 = vpop.f32.mrb[0].mxu0
        %735 = vmatprep.mubr.f32.mxu0 0.0
        %736 = vmatmul.mubr.f32.gmra.mrb[0].mxu0 %v451
        %v737 = vpop.f32.mrb[0].mxu0
        %v738 = vadd.f32 0.0, %v737
        %v739 = vpop.f32.mrb[0].mxu0
        %740 = vdwg.mxu0
        %v742 = vsel %vm443, %v426, 0
        %v745 = vsel %vm443, %v430, 0
        %v748 = vsel %vm443, %v422, 0
        %v751 = vsel %vm443, %v434, 0
        %v754 = vsel %vm443, %v438, 0
        %v757 = vsel %vm443, %v442, 0
        %759 = vmatprep.subr.mxu0 0.0
        %760 = vmatpush1.xpose.msra.mxu0 %v748
        %761 = vmatprep.subr.mxu0 0.0
        %762 = vmatpush1.xpose.msra.mxu0 %v751
        %763 = vmatprep.subr.mxu0 0.0
        %764 = vmatpush1.xpose.msra.mxu0 %v754
        %765 = vmatprep.subr.mxu0 0.0
        %766 = vmatpush1.xpose.msra.mxu0 %v757
        %767 = vmatprep.subr.mxu0 0.0
        %768 = vmatpush1.xpose.msra.mxu0 0.0
        %769 = vmatprep.subr.mxu0 0.0
        %770 = vmatpush1.xpose.msra.mxu0 0.0
        %771 = vmatprep.subr.mxu0 0.0
        %772 = vmatpush1.xpose.msra.mxu0 0.0
        %773 = vmatprep.subr.mxu0 0.0
        %774 = vmatpush1.xpose.msra.mxu0 0.0
        %775 = vmatprep.subr.mxu0 0.0
        %776 = vmatpush1.xpose.msra.mxu0 0.0
        %777 = vmatprep.subr.mxu0 0.0
        %778 = vmatpush1.xpose.msra.mxu0 0.0
        %779 = vmatprep.subr.mxu0 0.0
        %780 = vmatpush1.xpose.msra.mxu0 0.0
        %781 = vmatprep.subr.mxu0 0.0
        %782 = vmatpush1.xpose.msra.mxu0 0.0
        %783 = vmatprep.subr.mxu0 0.0
        %784 = vmatpush1.xpose.msra.mxu0 0.0
        %785 = vmatprep.subr.mxu0 0.0
        %786 = vmatpush1.xpose.msra.mxu0 0.0
        %787 = vmatprep.subr.mxu0 0.0
        %788 = vmatpush1.xpose.msra.mxu0 0.0
        %789 = vmatprep.subr.mxu0 0.0
        %790 = vmatpush1.xpose.msra.mxu0 0.0
        %791 = vmatprep.subr.mxu0 0.0
        %792 = vmatpush1.xpose.msra.mxu0 0.0
        %793 = vmatprep.subr.mxu0 0.0
        %794 = vmatpush1.xpose.msra.mxu0 0.0
        %795 = vmatprep.subr.mxu0 0.0
        %796 = vmatpush1.xpose.msra.mxu0 0.0
        %797 = vmatprep.subr.mxu0 0.0
        %798 = vmatpush1.xpose.msra.mxu0 0.0
        %799 = vmatprep.subr.mxu0 0.0
        %800 = vmatpush1.xpose.msra.mxu0 0.0
        %801 = vmatprep.subr.mxu0 0.0
        %802 = vmatpush1.xpose.msra.mxu0 0.0
        %803 = vmatprep.subr.mxu0 0.0
        %804 = vmatpush1.xpose.msra.mxu0 0.0
        %805 = vmatprep.subr.mxu0 0.0
        %806 = vmatpush1.xpose.msra.mxu0 0.0
        %807 = vmatprep.subr.mxu0 0.0
        %808 = vmatpush1.xpose.msra.mxu0 0.0
        %809 = vmatprep.subr.mxu0 0.0
        %810 = vmatpush1.xpose.msra.mxu0 0.0
        %811 = vmatprep.subr.mxu0 0.0
        %812 = vmatpush1.xpose.msra.mxu0 0.0
        %813 = vmatprep.subr.mxu0 0.0
        %814 = vmatpush1.xpose.msra.mxu0 0.0
        %815 = vmatprep.subr.mxu0 0.0
        %816 = vmatpush1.xpose.msra.mxu0 0.0
        %817 = vmatprep.subr.mxu0 0.0
        %818 = vmatpush1.xpose.msra.mxu0 0.0
        %819 = vmatprep.subr.mxu0 0.0
        %820 = vmatpush1.xpose.msra.mxu0 0.0
        %821 = vmatprep.subr.mxu0 0.0
        %822 = vmatpush1.xpose.msra.mxu0 0.0
        %823 = vmatprep.mubr.f32.mxu0 0.0
        %824 = vmatmul.mubr.f32.gmra.mrb[0].mxu0 %v742
        %v825 = vpop.f32.mrb[0].mxu0
        %v826 = vadd.f32 0.0, %v825
        %v827 = vpop.f32.mrb[0].mxu0
        %828 = vmatprep.mubr.f32.mxu0 0.0
        %829 = vmatmul.mubr.f32.gmra.mrb[0].mxu0 %v745
        %v830 = vpop.f32.mrb[0].mxu0
        %v831 = vadd.f32 0.0, %v830
        %v832 = vpop.f32.mrb[0].mxu0
        %833 = vmatprep.mubr.f32.mxu0 0.0
        %834 = vmatmul.mubr.f32.gmra.mrb[0].mxu0 %v451
        %v835 = vpop.f32.mrb[0].mxu0
        %v836 = vadd.f32 0.0, %v835
        %v837 = vpop.f32.mrb[0].mxu0
        %838 = vdwg.mxu0
        %v839 = vsel %vm443, %v439, 0.0
        %840 = vadd.xlane.f32.xlu0 %v839
        %v841 = vpop.xlane.xlu0 %840
        %v842 = vsel %vm443, %v440, 0.0
        %843 = vadd.xlane.f32.xlu0 %v842
        %v844 = vpop.xlane.xlu0 %843
        %v845 = vsel %vm443, %v441, 0.0
        %846 = vadd.xlane.f32.xlu0 %v845
        %v847 = vpop.xlane.xlu0 %846
        %v848 = vsel %vm443, %v442, 0.0
        %849 = vadd.xlane.f32.xlu0 %v848
        %v850 = vpop.xlane.xlu0 %849
        %v851 = vadd.f32 %v542, %v841
        %v852 = vadd.f32 %v640, %v844
        %v853 = vadd.f32 %v738, %v847
        %v854 = vadd.f32 %v836, %v850
        %v855 = vmul.f32 %v532, 2.0
        %v856 = vmul.f32 %v630, 2.0
        %v857 = vmul.f32 %v728, 2.0
        %v858 = vmul.f32 %v826, 2.0
        %863 = vrot.lane.b32.xlu0 %v855, 16
        %v864 = vpop.permute.xlu0 %863
        %865 = vrot.lane.b32.xlu0 %v856, 16
        %v866 = vpop.permute.xlu0 %865
        %867 = vrot.lane.b32.xlu0 %v857, 16
        %v868 = vpop.permute.xlu0 %867
        %869 = vrot.lane.b32.xlu0 %v858, 16
        %v870 = vpop.permute.xlu0 %869
        %v875 = vsub.f32 %v851, %v864
        %v876 = vsub.f32 %v852, %v866
        %v877 = vsub.f32 %v853, %v868
        %v878 = vsub.f32 %v854, %v870
        %v879 = vmax.f32 %v875, 0.0
        %v880 = vmax.f32 %v876, 0.0
        %v881 = vmax.f32 %v877, 0.0
        %v882 = vmax.f32 %v878, 0.0
        %v883 = vrsqrt.pop %v542
        %v884 = vmul.f32 %v542, %v883
        %vm885 = vcmp.eq.f32.partialorder %v542, inf
        %v886 = vsel %vm885, %v542, %v884
        %vm887 = vcmp.eq.f32.partialorder %v542, 0.0
        %v888 = vand.u32 %v542, 2147483648
        %v889 = vsel %vm887, %v888, %v886
        %v890 = vrsqrt.pop %v640
        %v891 = vmul.f32 %v640, %v890
        %vm892 = vcmp.eq.f32.partialorder %v640, inf
        %v893 = vsel %vm892, %v640, %v891
        %vm894 = vcmp.eq.f32.partialorder %v640, 0.0
        %v895 = vand.u32 %v640, 2147483648
        %v896 = vsel %vm894, %v895, %v893
        %v897 = vrsqrt.pop %v738
        %v898 = vmul.f32 %v738, %v897
        %vm899 = vcmp.eq.f32.partialorder %v738, inf
        %v900 = vsel %vm899, %v738, %v898
        %vm901 = vcmp.eq.f32.partialorder %v738, 0.0
        %v902 = vand.u32 %v738, 2147483648
        %v903 = vsel %vm901, %v902, %v900
        %v904 = vrsqrt.pop %v836
        %v905 = vmul.f32 %v836, %v904
        %vm906 = vcmp.eq.f32.partialorder %v836, inf
        %v907 = vsel %vm906, %v836, %v905
        %vm908 = vcmp.eq.f32.partialorder %v836, 0.0
        %v909 = vand.u32 %v836, 2147483648
        %v910 = vsel %vm908, %v909, %v907
        %v911 = vrsqrt.pop %v879
        %v912 = vmul.f32 %v879, %v911
        %vm913 = vcmp.eq.f32.partialorder %v879, inf
        %v914 = vsel %vm913, %v879, %v912
        %vm915 = vcmp.eq.f32.partialorder %v879, 0.0
        %v916 = vand.u32 %v879, 2147483648
        %v917 = vsel %vm915, %v916, %v914
        %v918 = vrsqrt.pop %v880
        %v919 = vmul.f32 %v880, %v918
        %vm920 = vcmp.eq.f32.partialorder %v880, inf
        %v921 = vsel %vm920, %v880, %v919
        %vm922 = vcmp.eq.f32.partialorder %v880, 0.0
        %v923 = vand.u32 %v880, 2147483648
        %v924 = vsel %vm922, %v923, %v921
        %v925 = vrsqrt.pop %v881
        %v926 = vmul.f32 %v881, %v925
        %vm927 = vcmp.eq.f32.partialorder %v881, inf
        %v928 = vsel %vm927, %v881, %v926
        %vm929 = vcmp.eq.f32.partialorder %v881, 0.0
        %v930 = vand.u32 %v881, 2147483648
        %v931 = vsel %vm929, %v930, %v928
        %v932 = vrsqrt.pop %v882
        %v933 = vmul.f32 %v882, %v932
        %vm934 = vcmp.eq.f32.partialorder %v882, inf
        %v935 = vsel %vm934, %v882, %v933
        %vm936 = vcmp.eq.f32.partialorder %v882, 0.0
        %v937 = vand.u32 %v882, 2147483648
        %v938 = vsel %vm936, %v937, %v935
        %943 = vrot.lane.b32.xlu0 %v889, 120
        %v944 = vpop.permute.xlu0 %943
        %945 = vrot.lane.b32.xlu0 %v896, 120
        %v946 = vpop.permute.xlu0 %945
        %947 = vrot.lane.b32.xlu0 %v903, 120
        %v948 = vpop.permute.xlu0 %947
        %949 = vrot.lane.b32.xlu0 %v910, 120
        %v950 = vpop.permute.xlu0 %949
        %v955 = vadd.f32 %v889, %v944
        %v956 = vadd.f32 %v896, %v946
        %v957 = vadd.f32 %v903, %v948
        %v958 = vadd.f32 %v910, %v950
        %v959 = vadd.f32 %v955, %v917
        %v960 = vadd.f32 %v956, %v924
        %v961 = vadd.f32 %v957, %v931
        %v962 = vadd.f32 %v958, %v938
        %v963 = vmul.f32 %v959, 0.5
        %v964 = vmul.f32 %v960, 0.5
        %v965 = vmul.f32 %v961, 0.5
        %v966 = vmul.f32 %v962, 0.5
        %v967 = vsub.f32 %v963, %v889
        %v968 = vsub.f32 %v964, %v896
        %v969 = vsub.f32 %v965, %v903
        %v970 = vsub.f32 %v966, %v910
        %v971 = vsub.f32 %v963, %v944
        %v972 = vsub.f32 %v964, %v946
        %v973 = vsub.f32 %v965, %v948
        %v974 = vsub.f32 %v966, %v950
        %v975 = vmul.f32 %v967, %v971
        %v976 = vmul.f32 %v968, %v972
        %v977 = vmul.f32 %v969, %v973
        %v978 = vmul.f32 %v970, %v974
        %v979 = vsub.f32 %v963, %v917
        %v980 = vsub.f32 %v964, %v924
        %v981 = vsub.f32 %v965, %v931
        %v982 = vsub.f32 %v966, %v938
        %v983 = vmul.f32 %v975, %v979
        %v984 = vmul.f32 %v976, %v980
        %v985 = vmul.f32 %v977, %v981
        %v986 = vmul.f32 %v978, %v982
        %v987 = vmul.f32 %v983, %v963
        %v988 = vmul.f32 %v984, %v964
        %v989 = vmul.f32 %v985, %v965
        %v990 = vmul.f32 %v986, %v966
        %v991 = vmax.f32 %v987, 0.0
        %v992 = vmax.f32 %v988, 0.0
        %v993 = vmax.f32 %v989, 0.0
        %v994 = vmax.f32 %v990, 0.0
        %v995 = vrsqrt.pop %v991
        %v996 = vmul.f32 %v991, %v995
        %vm997 = vcmp.eq.f32.partialorder %v991, inf
        %v998 = vsel %vm997, %v991, %v996
        %vm999 = vcmp.eq.f32.partialorder %v991, 0.0
        %v1000 = vand.u32 %v991, 2147483648
        %v1001 = vsel %vm999, %v1000, %v998
        %v1002 = vrsqrt.pop %v992
        %v1003 = vmul.f32 %v992, %v1002
        %vm1004 = vcmp.eq.f32.partialorder %v992, inf
        %v1005 = vsel %vm1004, %v992, %v1003
        %vm1006 = vcmp.eq.f32.partialorder %v992, 0.0
        %v1007 = vand.u32 %v992, 2147483648
        %v1008 = vsel %vm1006, %v1007, %v1005
        %v1009 = vrsqrt.pop %v993
        %v1010 = vmul.f32 %v993, %v1009
        %vm1011 = vcmp.eq.f32.partialorder %v993, inf
        %v1012 = vsel %vm1011, %v993, %v1010
        %vm1013 = vcmp.eq.f32.partialorder %v993, 0.0
        %v1014 = vand.u32 %v993, 2147483648
        %v1015 = vsel %vm1013, %v1014, %v1012
        %v1016 = vrsqrt.pop %v994
        %v1017 = vmul.f32 %v994, %v1016
        %vm1018 = vcmp.eq.f32.partialorder %v994, inf
        %v1019 = vsel %vm1018, %v994, %v1017
        %vm1020 = vcmp.eq.f32.partialorder %v994, 0.0
        %v1021 = vand.u32 %v994, 2147483648
        %v1022 = vsel %vm1020, %v1021, %v1019
        %v1023 = vpow.pop %v537
        %v1024 = vpow.pop %v635
        %v1025 = vpow.pop %v733
        %v1026 = vpow.pop %v831
        %v1027 = vsub.f32 %v1023, 1.0
        %v1028 = vsub.f32 %v1024, 1.0
        %v1029 = vsub.f32 %v1025, 1.0
        %v1030 = vsub.f32 %v1026, 1.0
        %vm1031 = vcmp.gt.f32.partialorder %v537, 0.0
        %vm1032 = vcmp.gt.f32.partialorder %v635, 0.0
        %vm1033 = vcmp.gt.f32.partialorder %v733, 0.0
        %vm1034 = vcmp.gt.f32.partialorder %v831, 0.0
        %v1035 = vsel %vm1031, 1.0, 0.0
        %v1036 = vsel %vm1032, 1.0, 0.0
        %v1037 = vsel %vm1033, 1.0, 0.0
        %v1038 = vsel %vm1034, 1.0, 0.0
        %1043 = vrot.lane.b32.xlu0 %v1027, 8
        %v1044 = vpop.permute.xlu0 %1043
        %1045 = vrot.lane.b32.xlu0 %v1028, 8
        %v1046 = vpop.permute.xlu0 %1045
        %1047 = vrot.lane.b32.xlu0 %v1029, 8
        %v1048 = vpop.permute.xlu0 %1047
        %1049 = vrot.lane.b32.xlu0 %v1030, 8
        %v1050 = vpop.permute.xlu0 %1049
        %1055 = vrot.lane.b32.xlu0 %v1035, 8
        %v1056 = vpop.permute.xlu0 %1055
        %1057 = vrot.lane.b32.xlu0 %v1036, 8
        %v1058 = vpop.permute.xlu0 %1057
        %1059 = vrot.lane.b32.xlu0 %v1037, 8
        %v1060 = vpop.permute.xlu0 %1059
        %1061 = vrot.lane.b32.xlu0 %v1038, 8
        %v1062 = vpop.permute.xlu0 %1061
        %1067 = vrot.lane.b32.xlu0 %v537, 8
        %v1068 = vpop.permute.xlu0 %1067
        %1069 = vrot.lane.b32.xlu0 %v635, 8
        %v1070 = vpop.permute.xlu0 %1069
        %1071 = vrot.lane.b32.xlu0 %v733, 8
        %v1072 = vpop.permute.xlu0 %1071
        %1073 = vrot.lane.b32.xlu0 %v831, 8
        %v1074 = vpop.permute.xlu0 %1073
        %v1075 = vld [vmem:[#allocation2] sm:$0xff]
        %1080 = vrot.lane.b32.xlu0 %v1001, 112
        %v1081 = vpop.permute.xlu0 %1080
        %1082 = vrot.lane.b32.xlu0 %v1008, 112
        %v1083 = vpop.permute.xlu0 %1082
        %1084 = vrot.lane.b32.xlu0 %v1015, 112
        %v1085 = vpop.permute.xlu0 %1084
        %1086 = vrot.lane.b32.xlu0 %v1022, 112
        %v1087 = vpop.permute.xlu0 %1086
        %1088 = vrot.lane.b32.xlu0 %v1044, 112
        %v1089 = vpop.permute.xlu0 %1088
        %1090 = vrot.lane.b32.xlu0 %v1046, 112
        %v1091 = vpop.permute.xlu0 %1090
        %1092 = vrot.lane.b32.xlu0 %v1048, 112
        %v1093 = vpop.permute.xlu0 %1092
        %1094 = vrot.lane.b32.xlu0 %v1050, 112
        %v1095 = vpop.permute.xlu0 %1094
        %1096 = vrot.lane.b32.xlu0 %v1056, 112
        %v1097 = vpop.permute.xlu0 %1096
        %1098 = vrot.lane.b32.xlu0 %v1058, 112
        %v1099 = vpop.permute.xlu0 %1098
        %1100 = vrot.lane.b32.xlu0 %v1060, 112
        %v1101 = vpop.permute.xlu0 %1100
        %1102 = vrot.lane.b32.xlu0 %v1062, 112
        %v1103 = vpop.permute.xlu0 %1102
        %1104 = vrot.lane.b32.xlu0 %v1068, 112
        %v1105 = vpop.permute.xlu0 %1104
        %1106 = vrot.lane.b32.xlu0 %v1070, 112
        %v1107 = vpop.permute.xlu0 %1106
        %1108 = vrot.lane.b32.xlu0 %v1072, 112
        %v1109 = vpop.permute.xlu0 %1108
        %1110 = vrot.lane.b32.xlu0 %v1074, 112
        %v1111 = vpop.permute.xlu0 %1110
        %vm1112 = vcmask 64512
        %v1113 = vsel %vm1112, %v1081, 0
        %v1115 = vsel %vm1112, %v1083, 0
        %v1117 = vsel %vm1112, %v1085, 0
        %v1119 = vsel %vm1112, %v1087, 0
        %v1121 = vsel %vm1112, %v1089, 0
        %v1123 = vsel %vm1112, %v1091, 0
        %v1125 = vsel %vm1112, %v1093, 0
        %v1127 = vsel %vm1112, %v1095, 0
        %v1129 = vsel %vm1112, %v1097, 0
        %v1131 = vsel %vm1112, %v1099, 0
        %v1133 = vsel %vm1112, %v1101, 0
        %v1135 = vsel %vm1112, %v1103, 0
        %v1137 = vsel %vm1112, %v1105, 0
        %v1139 = vsel %vm1112, %v1107, 0
        %v1141 = vsel %vm1112, %v1109, 0
        %v1143 = vsel %vm1112, %v1111, 0
        %1145 = vmatprep.subr.mxu0 0.0
        %1146 = vmatpush1.msra.mxu0 %v1075
        %1147 = vmatprep.subr.mxu0 0.0
        %1148 = vmatpush1.msra.mxu0 0.0
        %1149 = vmatprep.subr.mxu0 0.0
        %1150 = vmatpush1.msra.mxu0 0.0
        %1151 = vmatprep.subr.mxu0 0.0
        %1152 = vmatpush1.msra.mxu0 0.0
        %1153 = vmatprep.subr.mxu0 0.0
        %1154 = vmatpush1.msra.mxu0 0.0
        %1155 = vmatprep.subr.mxu0 0.0
        %1156 = vmatpush1.msra.mxu0 0.0
        %1157 = vmatprep.subr.mxu0 0.0
        %1158 = vmatpush1.msra.mxu0 0.0
        %1159 = vmatprep.subr.mxu0 0.0
        %1160 = vmatpush1.msra.mxu0 0.0
        %1161 = vmatprep.subr.mxu0 0.0
        %1162 = vmatpush1.msra.mxu0 0.0
        %1163 = vmatprep.subr.mxu0 0.0
        %1164 = vmatpush1.msra.mxu0 0.0
        %1165 = vmatprep.subr.mxu0 0.0
        %1166 = vmatpush1.msra.mxu0 0.0
        %1167 = vmatprep.subr.mxu0 0.0
        %1168 = vmatpush1.msra.mxu0 0.0
        %1169 = vmatprep.subr.mxu0 0.0
        %1170 = vmatpush1.msra.mxu0 0.0
        %1171 = vmatprep.subr.mxu0 0.0
        %1172 = vmatpush1.msra.mxu0 0.0
        %1173 = vmatprep.subr.mxu0 0.0
        %1174 = vmatpush1.msra.mxu0 0.0
        %1175 = vmatprep.subr.mxu0 0.0
        %1176 = vmatpush1.msra.mxu0 0.0
        %1177 = vmatprep.subr.mxu0 0.0
        %1178 = vmatpush1.msra.mxu0 0.0
        %1179 = vmatprep.subr.mxu0 0.0
        %1180 = vmatpush1.msra.mxu0 0.0
        %1181 = vmatprep.subr.mxu0 0.0
        %1182 = vmatpush1.msra.mxu0 0.0
        %1183 = vmatprep.subr.mxu0 0.0
        %1184 = vmatpush1.msra.mxu0 0.0
        %1185 = vmatprep.subr.mxu0 0.0
        %1186 = vmatpush1.msra.mxu0 0.0
        %1187 = vmatprep.subr.mxu0 0.0
        %1188 = vmatpush1.msra.mxu0 0.0
        %1189 = vmatprep.subr.mxu0 0.0
        %1190 = vmatpush1.msra.mxu0 0.0
        %1191 = vmatprep.subr.mxu0 0.0
        %1192 = vmatpush1.msra.mxu0 0.0
        %1193 = vmatprep.subr.mxu0 0.0
        %1194 = vmatpush1.msra.mxu0 0.0
        %1195 = vmatprep.subr.mxu0 0.0
        %1196 = vmatpush1.msra.mxu0 0.0
        %1197 = vmatprep.subr.mxu0 0.0
        %1198 = vmatpush1.msra.mxu0 0.0
        %1199 = vmatprep.subr.mxu0 0.0
        %1200 = vmatpush1.msra.mxu0 0.0
        %1201 = vmatprep.subr.mxu0 0.0
        %1202 = vmatpush1.msra.mxu0 0.0
        %1203 = vmatprep.subr.mxu0 0.0
        %1204 = vmatpush1.msra.mxu0 0.0
        %1205 = vmatprep.subr.mxu0 0.0
        %1206 = vmatpush1.msra.mxu0 0.0
        %1207 = vmatprep.subr.mxu0 0.0
        %1208 = vmatpush1.msra.mxu0 0.0
        %1209 = vmatprep.mubr.f32.mxu0 0.0
        %1210 = vmatmul.mubr.f32.gmra.mrb[0].mxu0 %v1113
        %v1211 = vpop.f32.mrb[0].mxu0
        %v1212 = vadd.f32 0.0, %v1211
        %v1213 = vpop.f32.mrb[0].mxu0
        %1214 = vmatprep.mubr.f32.mxu0 0.0
        %1215 = vmatmul.mubr.f32.gmra.mrb[0].mxu0 %v1115
        %v1216 = vpop.f32.mrb[0].mxu0
        %v1217 = vadd.f32 0.0, %v1216
        %v1218 = vpop.f32.mrb[0].mxu0
        %1219 = vmatprep.mubr.f32.mxu0 0.0
        %1220 = vmatmul.mubr.f32.gmra.mrb[0].mxu0 %v1117
        %v1221 = vpop.f32.mrb[0].mxu0
        %v1222 = vadd.f32 0.0, %v1221
        %v1223 = vpop.f32.mrb[0].mxu0
        %1224 = vmatprep.mubr.f32.mxu0 0.0
        %1225 = vmatmul.mubr.f32.gmra.mrb[0].mxu0 %v1119
        %v1226 = vpop.f32.mrb[0].mxu0
        %v1227 = vadd.f32 0.0, %v1226
        %v1228 = vpop.f32.mrb[0].mxu0
        %1229 = vmatprep.mubr.f32.mxu0 0.0
        %1230 = vmatmul.mubr.f32.gmra.mrb[0].mxu0 %v1121
        %v1231 = vpop.f32.mrb[0].mxu0
        %v1232 = vadd.f32 0.0, %v1231
        %v1233 = vpop.f32.mrb[0].mxu0
        %1234 = vmatprep.mubr.f32.mxu0 0.0
        %1235 = vmatmul.mubr.f32.gmra.mrb[0].mxu0 %v1123
        %v1236 = vpop.f32.mrb[0].mxu0
        %v1237 = vadd.f32 0.0, %v1236
        %v1238 = vpop.f32.mrb[0].mxu0
        %1239 = vmatprep.mubr.f32.mxu0 0.0
        %1240 = vmatmul.mubr.f32.gmra.mrb[0].mxu0 %v1125
        %v1241 = vpop.f32.mrb[0].mxu0
        %v1242 = vadd.f32 0.0, %v1241
        %v1243 = vpop.f32.mrb[0].mxu0
        %1244 = vmatprep.mubr.f32.mxu0 0.0
        %1245 = vmatmul.mubr.f32.gmra.mrb[0].mxu0 %v1127
        %v1246 = vpop.f32.mrb[0].mxu0
        %v1247 = vadd.f32 0.0, %v1246
        %v1248 = vpop.f32.mrb[0].mxu0
        %1249 = vmatprep.mubr.f32.mxu0 0.0
        %1250 = vmatmul.mubr.f32.gmra.mrb[0].mxu0 %v1129
        %v1251 = vpop.f32.mrb[0].mxu0
        %v1252 = vadd.f32 0.0, %v1251
        %v1253 = vpop.f32.mrb[0].mxu0
        %1254 = vmatprep.mubr.f32.mxu0 0.0
        %1255 = vmatmul.mubr.f32.gmra.mrb[0].mxu0 %v1131
        %v1256 = vpop.f32.mrb[0].mxu0
        %v1257 = vadd.f32 0.0, %v1256
        %v1258 = vpop.f32.mrb[0].mxu0
        %1259 = vmatprep.mubr.f32.mxu0 0.0
        %1260 = vmatmul.mubr.f32.gmra.mrb[0].mxu0 %v1133
        %v1261 = vpop.f32.mrb[0].mxu0
        %v1262 = vadd.f32 0.0, %v1261
        %v1263 = vpop.f32.mrb[0].mxu0
        %1264 = vmatprep.mubr.f32.mxu0 0.0
        %1265 = vmatmul.mubr.f32.gmra.mrb[0].mxu0 %v1135
        %v1266 = vpop.f32.mrb[0].mxu0
        %v1267 = vadd.f32 0.0, %v1266
        %v1268 = vpop.f32.mrb[0].mxu0
        %1269 = vmatprep.mubr.f32.mxu0 0.0
        %1270 = vmatmul.mubr.f32.gmra.mrb[0].mxu0 %v1137
        %v1271 = vpop.f32.mrb[0].mxu0
        %v1272 = vadd.f32 0.0, %v1271
        %v1273 = vpop.f32.mrb[0].mxu0
        %1274 = vmatprep.mubr.f32.mxu0 0.0
        %1275 = vmatmul.mubr.f32.gmra.mrb[0].mxu0 %v1139
        %v1276 = vpop.f32.mrb[0].mxu0
        %v1277 = vadd.f32 0.0, %v1276
        %v1278 = vpop.f32.mrb[0].mxu0
        %1279 = vmatprep.mubr.f32.mxu0 0.0
        %1280 = vmatmul.mubr.f32.gmra.mrb[0].mxu0 %v1141
        %v1281 = vpop.f32.mrb[0].mxu0
        %v1282 = vadd.f32 0.0, %v1281
        %v1283 = vpop.f32.mrb[0].mxu0
        %1284 = vmatprep.mubr.f32.mxu0 0.0
        %1285 = vmatmul.mubr.f32.gmra.mrb[0].mxu0 %v1143
        %v1286 = vpop.f32.mrb[0].mxu0
        %v1287 = vadd.f32 0.0, %v1286
        %v1288 = vpop.f32.mrb[0].mxu0
        %1289 = vdwg.mxu0
        %v1290 = vld [vmem:[%s2] sm:$0x1]
        %vm1291 = vcmp.lt.f32.partialorder %v1272, 0.0
        %vm1292 = vcmp.lt.f32.partialorder %v1277, 0.0
        %vm1293 = vcmp.lt.f32.partialorder %v1282, 0.0
        %vm1294 = vcmp.lt.f32.partialorder %v1287, 0.0
        %v1295 = vsel %vm1291, 1.0, 0.0
        %v1296 = vsel %vm1292, 1.0, 0.0
        %v1297 = vsel %vm1293, 1.0, 0.0
        %v1298 = vsel %vm1294, 1.0, 0.0
        %vm1299 = vcmp.eq.f32.partialorder %v1272, 0.0
        %vm1300 = vcmp.eq.f32.partialorder %v1277, 0.0
        %vm1301 = vcmp.eq.f32.partialorder %v1282, 0.0
        %vm1302 = vcmp.eq.f32.partialorder %v1287, 0.0
        %v1303 = vsel %vm1299, 1.0, 0.0
        %v1304 = vsel %vm1300, 1.0, 0.0
        %v1305 = vsel %vm1301, 1.0, 0.0
        %v1306 = vsel %vm1302, 1.0, 0.0
        %v1308 = vlaneseq
        %v1309 = vshrl.u32 %v1308, 7
        %v1310 = vsub.s32 0, %v1309
        %v1311 = vrot.slane %v1290, %v1310
        %v1313 = vmul.f32 %v1303, %v1311
        %v1314 = vmul.f32 %v1304, %v1311
        %v1315 = vmul.f32 %v1305, %v1311
        %v1316 = vmul.f32 %v1306, %v1311
        %v1317 = vadd.f32 %v1295, %v1313
        %v1318 = vadd.f32 %v1296, %v1314
        %v1319 = vadd.f32 %v1297, %v1315
        %v1320 = vadd.f32 %v1298, %v1316
        %v1321 = vld [vmem:[%s1] sm:$0xff]
        %v1322 = vld [vmem:[%s1 + $0x8] sm:$0xff]
        %v1323 = vld [vmem:[%s1 + $0x10] sm:$0xff]
        %v1324 = vld [vmem:[%s1 + $0x18] sm:$0xff]
        %v1325 = vld [vmem:[%s1 + $0x20] sm:$0xff]
        %v1326 = vld [vmem:[%s1 + $0x28] sm:$0xff]
        %v1327 = vld [vmem:[%s1 + $0x30] sm:$0xff]
        %v1328 = vld [vmem:[%s1 + $0x38] sm:$0xff]
        %v1330 = vsel %vm443, %v1317, 0
        %v1333 = vsel %vm443, %v1318, 0
        %v1336 = vsel %vm443, %v1319, 0
        %v1339 = vsel %vm443, %v1320, 0
        %1341 = vmatprep.subr.mxu0 0.0
        %1342 = vmatpush1.msra.mxu0 %v1321
        %1343 = vmatprep.subr.mxu0 0.0
        %1344 = vmatpush1.msra.mxu0 %v1322
        %1345 = vmatprep.subr.mxu0 0.0
        %1346 = vmatpush1.msra.mxu0 %v1323
        %1347 = vmatprep.subr.mxu0 0.0
        %1348 = vmatpush1.msra.mxu0 %v1324
        %1349 = vmatprep.subr.mxu0 0.0
        %1350 = vmatpush1.msra.mxu0 %v1325
        %1351 = vmatprep.subr.mxu0 0.0
        %1352 = vmatpush1.msra.mxu0 %v1326
        %1353 = vmatprep.subr.mxu0 0.0
        %1354 = vmatpush1.msra.mxu0 %v1327
        %1355 = vmatprep.subr.mxu0 0.0
        %1356 = vmatpush1.msra.mxu0 %v1328
        %1357 = vmatprep.subr.mxu0 0.0
        %1358 = vmatpush1.msra.mxu0 0.0
        %1359 = vmatprep.subr.mxu0 0.0
        %1360 = vmatpush1.msra.mxu0 0.0
        %1361 = vmatprep.subr.mxu0 0.0
        %1362 = vmatpush1.msra.mxu0 0.0
        %1363 = vmatprep.subr.mxu0 0.0
        %1364 = vmatpush1.msra.mxu0 0.0
        %1365 = vmatprep.subr.mxu0 0.0
        %1366 = vmatpush1.msra.mxu0 0.0
        %1367 = vmatprep.subr.mxu0 0.0
        %1368 = vmatpush1.msra.mxu0 0.0
        %1369 = vmatprep.subr.mxu0 0.0
        %1370 = vmatpush1.msra.mxu0 0.0
        %1371 = vmatprep.subr.mxu0 0.0
        %1372 = vmatpush1.msra.mxu0 0.0
        %1373 = vmatprep.subr.mxu0 0.0
        %1374 = vmatpush1.msra.mxu0 0.0
        %1375 = vmatprep.subr.mxu0 0.0
        %1376 = vmatpush1.msra.mxu0 0.0
        %1377 = vmatprep.subr.mxu0 0.0
        %1378 = vmatpush1.msra.mxu0 0.0
        %1379 = vmatprep.subr.mxu0 0.0
        %1380 = vmatpush1.msra.mxu0 0.0
        %1381 = vmatprep.subr.mxu0 0.0
        %1382 = vmatpush1.msra.mxu0 0.0
        %1383 = vmatprep.subr.mxu0 0.0
        %1384 = vmatpush1.msra.mxu0 0.0
        %1385 = vmatprep.subr.mxu0 0.0
        %1386 = vmatpush1.msra.mxu0 0.0
        %1387 = vmatprep.subr.mxu0 0.0
        %1388 = vmatpush1.msra.mxu0 0.0
        %1389 = vmatprep.subr.mxu0 0.0
        %1390 = vmatpush1.msra.mxu0 0.0
        %1391 = vmatprep.subr.mxu0 0.0
        %1392 = vmatpush1.msra.mxu0 0.0
        %1393 = vmatprep.subr.mxu0 0.0
        %1394 = vmatpush1.msra.mxu0 0.0
        %1395 = vmatprep.subr.mxu0 0.0
        %1396 = vmatpush1.msra.mxu0 0.0
        %1397 = vmatprep.subr.mxu0 0.0
        %1398 = vmatpush1.msra.mxu0 0.0
        %1399 = vmatprep.subr.mxu0 0.0
        %1400 = vmatpush1.msra.mxu0 0.0
        %1401 = vmatprep.subr.mxu0 0.0
        %1402 = vmatpush1.msra.mxu0 0.0
        %1403 = vmatprep.subr.mxu0 0.0
        %1404 = vmatpush1.msra.mxu0 0.0
        %1405 = vmatprep.mubr.f32.mxu0 0.0
        %1406 = vmatmul.mubr.f32.gmra.mrb[0].mxu0 %v1330
        %v1407 = vpop.f32.mrb[0].mxu0
        %v1408 = vadd.f32 2.0, %v1407
        %v1409 = vpop.f32.mrb[0].mxu0
        %1410 = vmatprep.mubr.f32.mxu0 0.0
        %1411 = vmatmul.mubr.f32.gmra.mrb[0].mxu0 %v1333
        %v1412 = vpop.f32.mrb[0].mxu0
        %v1413 = vadd.f32 2.0, %v1412
        %v1414 = vpop.f32.mrb[0].mxu0
        %1415 = vmatprep.mubr.f32.mxu0 0.0
        %1416 = vmatmul.mubr.f32.gmra.mrb[0].mxu0 %v1336
        %v1417 = vpop.f32.mrb[0].mxu0
        %v1418 = vadd.f32 2.0, %v1417
        %v1419 = vpop.f32.mrb[0].mxu0
        %1420 = vmatprep.mubr.f32.mxu0 0.0
        %1421 = vmatmul.mubr.f32.gmra.mrb[0].mxu0 %v1339
        %v1422 = vpop.f32.mrb[0].mxu0
        %v1423 = vadd.f32 2.0, %v1422
        %v1424 = vpop.f32.mrb[0].mxu0
        %1425 = vdwg.mxu0
        %v1426 = vlog2.pop %v1408
        %v1427 = vmul.f32 %v1426, 0.6931472
        %v1428 = vlog2.pop %v1413
        %v1429 = vmul.f32 %v1428, 0.6931472
        %v1430 = vlog2.pop %v1418
        %v1431 = vmul.f32 %v1430, 0.6931472
        %v1432 = vlog2.pop %v1423
        %v1433 = vmul.f32 %v1432, 0.6931472
        %v1434 = vmul.f32 %v1427, 1.442695
        %v1435 = vmul.f32 %v1429, 1.442695
        %v1436 = vmul.f32 %v1431, 1.442695
        %v1437 = vmul.f32 %v1433, 1.442695
        %1442 = vrot.lane.b32.xlu0 %v1434, 8
        %v1443 = vpop.permute.xlu0 %1442
        %1444 = vrot.lane.b32.xlu0 %v1435, 8
        %v1445 = vpop.permute.xlu0 %1444
        %1446 = vrot.lane.b32.xlu0 %v1436, 8
        %v1447 = vpop.permute.xlu0 %1446
        %1448 = vrot.lane.b32.xlu0 %v1437, 8
        %v1449 = vpop.permute.xlu0 %1448
        %v1454 = vrcp.pop %v1443
        %v1455 = vmul.f32 %v1027, %v1454
        %v1456 = vrcp.pop %v1445
        %v1457 = vmul.f32 %v1028, %v1456
        %v1458 = vrcp.pop %v1447
        %v1459 = vmul.f32 %v1029, %v1458
        %v1460 = vrcp.pop %v1449
        %v1461 = vmul.f32 %v1030, %v1460
        %1466 = vrot.lane.b32.xlu0 %v1455, 120
        %v1467 = vpop.permute.xlu0 %1466
        %1468 = vrot.lane.b32.xlu0 %v1457, 120
        %v1469 = vpop.permute.xlu0 %1468
        %1470 = vrot.lane.b32.xlu0 %v1459, 120
        %v1471 = vpop.permute.xlu0 %1470
        %1472 = vrot.lane.b32.xlu0 %v1461, 120
        %v1473 = vpop.permute.xlu0 %1472
        %v1478 = vsel %vm1112, %v1467, 0.0
        %1479 = vadd.xlane.f32.xlu0 %v1478
        %v1480 = vpop.xlane.xlu0 %1479
        %v1481 = vsel %vm1112, %v1469, 0.0
        %1482 = vadd.xlane.f32.xlu0 %v1481
        %v1483 = vpop.xlane.xlu0 %1482
        %v1484 = vsel %vm1112, %v1471, 0.0
        %1485 = vadd.xlane.f32.xlu0 %v1484
        %v1486 = vpop.xlane.xlu0 %1485
        %v1487 = vsel %vm1112, %v1473, 0.0
        %1488 = vadd.xlane.f32.xlu0 %v1487
        %v1489 = vpop.xlane.xlu0 %1488
        %vm1490 = vcmp.gt.f32.partialorder %v1480, 0.0
        %vm1491 = vcmp.gt.f32.partialorder %v1483, 0.0
        %vm1492 = vcmp.gt.f32.partialorder %v1486, 0.0
        %vm1493 = vcmp.gt.f32.partialorder %v1489, 0.0
        %v1494 = vrcp.pop %v1480
        %v1495 = vmul.f32 1.0, %v1494
        %v1496 = vrcp.pop %v1483
        %v1497 = vmul.f32 1.0, %v1496
        %v1498 = vrcp.pop %v1486
        %v1499 = vmul.f32 1.0, %v1498
        %v1500 = vrcp.pop %v1489
        %v1501 = vmul.f32 1.0, %v1500
        %v1502 = vsel %vm1490, %v1495, 0.0
        %v1503 = vsel %vm1491, %v1497, 0.0
        %v1504 = vsel %vm1492, %v1499, 0.0
        %v1505 = vsel %vm1493, %v1501, 0.0
        %v1506 = vmul.f32 %v1232, %v1502
        %v1507 = vmul.f32 %v1237, %v1503
        %v1508 = vmul.f32 %v1242, %v1504
        %v1509 = vmul.f32 %v1247, %v1505
        %vm1510 = vcmp.gt.f32.partialorder %v1252, 0.5
        %vm1511 = vcmp.gt.f32.partialorder %v1257, 0.5
        %vm1512 = vcmp.gt.f32.partialorder %v1262, 0.5
        %vm1513 = vcmp.gt.f32.partialorder %v1267, 0.5
        %v1514 = vsel %vm1510, 1.0, 0.0
        %v1515 = vsel %vm1511, 1.0, 0.0
        %v1516 = vsel %vm1512, 1.0, 0.0
        %v1517 = vsel %vm1513, 1.0, 0.0
        %v1518 = vadd.f32 %v1212, 0.0
        %v1519 = vadd.f32 %v1217, 0.0
        %v1520 = vadd.f32 %v1222, 0.0
        %v1521 = vadd.f32 %v1227, 0.0
        %v1522 = vmul.f32 %v1506, %v1514
        %v1523 = vmul.f32 %v1507, %v1515
        %v1524 = vmul.f32 %v1508, %v1516
        %v1525 = vmul.f32 %v1509, %v1517
        %v1526 = vmul.f32 %v1522, %v1518
        %v1527 = vmul.f32 %v1523, %v1519
        %v1528 = vmul.f32 %v1524, %v1520
        %v1529 = vmul.f32 %v1525, %v1521
        %v1530 = vmax.f32 %v1526, 0.0
        %v1531 = vmax.f32 %v1527, 0.0
        %v1532 = vmax.f32 %v1528, 0.0
        %v1533 = vmax.f32 %v1529, 0.0
        %v1534 = vsel %vm443, %v1530, 0.0
        %1535 = vadd.xlane.f32.xlu0 %v1534
        %v1536 = vpop.xlane.xlu0 %1535
        %v1537 = vsel %vm443, %v1531, 0.0
        %1538 = vadd.xlane.f32.xlu0 %v1537
        %v1539 = vpop.xlane.xlu0 %1538
        %v1540 = vsel %vm443, %v1532, 0.0
        %1541 = vadd.xlane.f32.xlu0 %v1540
        %v1542 = vpop.xlane.xlu0 %1541
        %v1543 = vsel %vm443, %v1533, 0.0
        %1544 = vadd.xlane.f32.xlu0 %v1543
        %v1545 = vpop.xlane.xlu0 %1544
        %vm1546 = vcmp.gt.f32.partialorder %v1530, 1e-16
        %vm1547 = vcmp.gt.f32.partialorder %v1531, 1e-16
        %vm1548 = vcmp.gt.f32.partialorder %v1532, 1e-16
        %vm1549 = vcmp.gt.f32.partialorder %v1533, 1e-16
        %v1550 = vsel %vm1546, 1.0, 0.0
        %v1551 = vsel %vm1547, 1.0, 0.0
        %v1552 = vsel %vm1548, 1.0, 0.0
        %v1553 = vsel %vm1549, 1.0, 0.0
        %v1554 = vsel %vm443, %v1550, 0.0
        %1555 = vadd.xlane.f32.xlu0 %v1554
        %v1556 = vpop.xlane.xlu0 %1555
        %v1557 = vsel %vm443, %v1551, 0.0
        %1558 = vadd.xlane.f32.xlu0 %v1557
        %v1559 = vpop.xlane.xlu0 %1558
        %v1560 = vsel %vm443, %v1552, 0.0
        %1561 = vadd.xlane.f32.xlu0 %v1560
        %v1562 = vpop.xlane.xlu0 %1561
        %v1563 = vsel %vm443, %v1553, 0.0
        %1564 = vadd.xlane.f32.xlu0 %v1563
        %v1565 = vpop.xlane.xlu0 %1564
        %v1566 = vld [vmem:[%s3] sm:$0xff]
        %v1567 = vld [vmem:[%s3 + $0x8] sm:$0xff]
        %v1568 = vld [vmem:[%s3 + $0x10] sm:$0xff]
        %v1569 = vld [vmem:[%s3 + $0x18] sm:$0xff]
        %v1570 = vmul.f32 %v1536, %v1566
        %v1571 = vmul.f32 %v1539, %v1567
        %v1572 = vmul.f32 %v1542, %v1568
        %v1573 = vmul.f32 %v1545, %v1569
        %vm1574 = vcmask 31744
        %v1575 = vsel %vm1574, %v1570, 0.0
        %v1576 = vsel %vm1574, %v1571, 0.0
        %v1577 = vadd.f32 %v1575, %v1576
        %v1578 = vsel %vm1574, %v1572, 0.0
        %v1579 = vadd.f32 %v1577, %v1578
        %v1580 = vsel %vm1574, %v1573, 0.0
        %v1581 = vadd.f32 %v1579, %v1580
        %v1582 = vrot.slane %v1581, 4
        %v1583 = vadd.f32 %v1581, %v1582
        %v1584 = vrot.slane %v1583, 2
        %v1585 = vadd.f32 %v1583, %v1584
        %v1586 = vrot.slane %v1585, 1
        %v1587 = vadd.f32 %v1585, %v1586
        %v1588 = vmul.f32 %v1556, %v1566
        %v1589 = vmul.f32 %v1559, %v1567
        %v1590 = vmul.f32 %v1562, %v1568
        %v1591 = vmul.f32 %v1565, %v1569
        %v1592 = vsel %vm1574, %v1588, 0.0
        %v1593 = vsel %vm1574, %v1589, 0.0
        %v1594 = vadd.f32 %v1592, %v1593
        %v1595 = vsel %vm1574, %v1590, 0.0
        %v1596 = vadd.f32 %v1594, %v1595
        %v1597 = vsel %vm1574, %v1591, 0.0
        %v1598 = vadd.f32 %v1596, %v1597
        %v1599 = vrot.slane %v1598, 4
        %v1600 = vadd.f32 %v1598, %v1599
        %v1601 = vrot.slane %v1600, 2
        %v1602 = vadd.f32 %v1600, %v1601
        %v1603 = vrot.slane %v1602, 1
        %v1604 = vadd.f32 %v1602, %v1603
        %v1605 = vadd.f32 %v1604, 1e-16
        %v1606 = vrcp.pop %v1605
        %v1607 = vmul.f32 %v1587, %v1606
        %vm1608 = vcmask 24576
        %1609 = vst.msk [vmem:[%s404] sm:$0x1] %vm1608, %v1607
        %s1610 = sand.u32 %s222, 1
        %s1611 = scalar_lea.sflag [#allocation4], %s1610
        %s1612 = sand.u32 %s222, 1
        %s1613 = scalar_lea.vmem [#allocation8], %s1612
        // Predicated region
        $region65: #{tpu_custom_call.1} parent=51 // pred_check
          %p1614 = pneg %p232
        $region66: #{tpu_custom_call.1} parent=51 // pred_check_branch
          %1616 = sbr.rel (%p1614) target = $region68
        $region67: #{tpu_custom_call.1} parent=51 // pred_region
          %s1618 = ssub.s32 16, 16
          %1619 = vsyncadd %s1611, %s1618
          %s1620 = smul.addr %s26, 16
          %s1621 = scalar_lea.hbm %s8, %s1620
          %s1623 = sshll.u32 %s1613, 4
          %s1624 = int_to_ptr.vmem [resolvable:$true] %s1623
          %1626 = dma.vmem_to_hbm [thread:$0]  %s1624, 16, %s1621, %s1611
        $region68: #{tpu_custom_call.1} parent=51 // pred_fallthru
          _
      $region52: #{tpu_custom_call.1} parent=5 // pred_fallthru
        _
      %p1627 = scmp.le.s32.totalorder 2, %s21
      // Predicated region
      $region69: #{tpu_custom_call.1} parent=5 // pred_check
        %p1628 = pneg %p1627
      $region70: #{tpu_custom_call.1} parent=5 // pred_check_branch
        %1630 = sbr.rel (%p1628) target = $region72
      $region71: #{tpu_custom_call.1} parent=5 // pred_region
        %s1631 = ssub.s32 %s21, 2
        // Predicated region
        $region73: #{tpu_custom_call.1} parent=71 // pred_check
          %p1632 = pneg %p238
        $region74: #{tpu_custom_call.1} parent=71 // pred_check_branch
          %1634 = sbr.rel (%p1632) target = $region76
        $region75: #{tpu_custom_call.1} parent=71 // pred_region
          %s1635 = sand.u32 %s223, 1
          %s1636 = scalar_lea.sflag [#allocation4], %s1635
          %s1637 = sand.u32 %s223, 1
          %s1638 = scalar_lea.vmem [#allocation8], %s1637
          %1639 = dma.done %s1636, 16
        $region76: #{tpu_custom_call.1} parent=71 // pred_fallthru
          _
      $region72: #{tpu_custom_call.1} parent=5 // pred_fallthru
        _
    $region6: #{tpu_custom_call.1} parent=1 // loop_footer
      %s25 = sadd.s32 1, %s21
    $region7: #{tpu_custom_call.1} parent=1 // loop_footer_branch
      %20 = sbr.rel target = $region3
    $region8: #{tpu_custom_call.1} parent=1 // loop_exit
      _
    %1640 = vsyncpa [#allocation3], 1
    %s1641 = scalar_lea.sflag [#allocation3], 1
    %1642 = vsyncpa %s1641, 1
    %1643 = vsyncpa [#allocation6], 1
    %s1644 = scalar_lea.sflag [#allocation6], 1
    %1645 = vsyncpa %s1644, 1
    %1646 = vsyncpa [#allocation4], 1
    %s1647 = scalar_lea.sflag [#allocation4], 1
    %1648 = vsyncpa %s1647, 1

</llo_original>
